<compile_context>
chip_gen: v5e
topology: v5e:2x2
jax: 0.10.0
libtpu: 0.0.40
codegen_flags: <defaults>
</compile_context>

<pallas_src>
import jax
import jax.numpy as jnp
from jax import lax
from jax.experimental import pallas as pl
from jax.experimental.pallas import tpu as pltpu


def mirror_conv_relu_kernel(x_ref, w_ref, o_ref, xp_ref, col_ref):
    # x_ref  : (1, Cin, H*W)   NCHW image, spatial dims pre-flattened (free reshape)
    # w_ref  : (9*Cin, Cout)   im2col-ordered weight, row = (ki*3+kj)*Cin + ci
    # o_ref  : (1, Cout, H*W)  NCHW-flat output slab (lane-dense store)
    # xp_ref : (H+2, W+2, Cin) VMEM scratch: reflection-padded channel-minor image
    # col_ref: (H, W, 9*Cin)   VMEM scratch: im2col patches
    Hp2, Wp2, Cin = xp_ref.shape
    H, W = Hp2 - 2, Wp2 - 2
    Cout = w_ref.shape[1]

    # ---- NCHW -> channel-minor, entirely in-kernel ---------------------------------
    # One small 2-D transpose (Cin, H*W) -> (H*W, Cin) (XLU), then a layout-preserving
    # reshape (major-dim split) to (H, W, Cin).  This replaces the former wrapper-side
    # XLA transpose and its full HBM round trip.
    x = jnp.transpose(x_ref[0]).reshape(H, W, Cin)           # (H, W, Cin)

    # ---- 1-pixel reflection halo built in VMEM (matches nn.ReflectionPad2d(1)) -----
    xp_ref[1:H + 1, 1:W + 1, :] = x
    xp_ref[0:1, 1:W + 1, :] = x[1:2]                         # top    <- row 1
    xp_ref[H + 1:H + 2, 1:W + 1, :] = x[H - 2:H - 1]         # bottom <- row H-2
    xp_ref[:, 0:1, :] = xp_ref[:, 2:3, :]                    # left   <- col 1   (incl. corners)
    xp_ref[:, W + 1:W + 2, :] = xp_ref[:, W - 1:W, :]        # right  <- col W-2 (incl. corners)

    # ---- im2col: pack the 9 shifted taps along channels -> (H, W, 9*Cin) -----------
    for ki in range(3):
        for kj in range(3):
            t = ki * 3 + kj
            col_ref[:, :, t * Cin:(t + 1) * Cin] = xp_ref[ki:ki + H, kj:kj + W, :]

    # ---- single MXU matmul: (H*W, 9*Cin) x (9*Cin, Cout), f32 accumulate -----------
    patches = col_ref[...].reshape(H * W, 9 * Cin)           # major-dim merge (cheap)
    acc = jnp.dot(patches, w_ref[...], preferred_element_type=jnp.float32)

    # ---- fused ReLU + small result transpose -> NCHW-flat, lane-dense store --------
    y = jnp.maximum(acc, 0.0)                                # (H*W, Cout), f32
    o_ref[0] = jnp.transpose(y).astype(o_ref.dtype)          # (Cout, H*W)


def mirror_padding_conv2d(x_nchw, weight_oihw):
    """x_nchw: (N, Cin, H, W); weight_oihw: (Cout, Cin, 3, 3). Returns (N, Cout, H, W)."""
    N, Cin, H, W = x_nchw.shape
    Cout = weight_oihw.shape[0]
    dtype = x_nchw.dtype

    # Only free reshapes + a tiny weight re-layout outside the kernel — no XLA
    # transpose of the activation tensors any more.
    x_flat = x_nchw.reshape(N, Cin, H * W)                                   # free
    w_mat = jnp.transpose(weight_oihw, (2, 3, 1, 0)).reshape(9 * Cin, Cout)  # tiny

    itemsize = jnp.dtype(dtype).itemsize
    cost = pl.CostEstimate(
        flops=2 * N * H * W * 9 * Cin * Cout,
        transcendentals=0,
        bytes_accessed=(N * Cin * H * W + 9 * Cin * Cout + N * Cout * H * W) * itemsize,
    )

    # One image per grid step (whole H*W plane resident in VMEM) — fine at these
    # shapes.  TODO(synk): spatial tiling with cross-tile reflection halos is not
    # implemented for very large H*W*Cin.
    out_flat = pl.pallas_call(
        mirror_conv_relu_kernel,
        out_shape=jax.ShapeDtypeStruct((N, Cout, H * W), dtype),
        grid=(N,),
        in_specs=[
            pl.BlockSpec((1, Cin, H * W), lambda n: (n, 0, 0)),
            pl.BlockSpec((9 * Cin, Cout), lambda n: (0, 0)),
        ],
        out_specs=pl.BlockSpec((1, Cout, H * W), lambda n: (n, 0, 0)),
        scratch_shapes=[
            pltpu.VMEM((H + 2, W + 2, Cin), dtype),   # reflection-padded image
            pltpu.VMEM((H, W, 9 * Cin), dtype),       # im2col patches
        ],
        compiler_params=pltpu.CompilerParams(
            dimension_semantics=("parallel",),
            vmem_limit_bytes=32 * 1024 * 1024,
        ),
        cost_estimate=cost,
    )(x_flat, w_mat)

    # Free reshape back to NCHW (kernel already wrote channel-major).
    return out_flat.reshape(N, Cout, H, W)


def _reference(x_nchw, weight_oihw):
    """Pure-JAX reference: reflect pad + conv (cross-correlation) + relu, NCHW."""
    x_pad = jnp.pad(x_nchw, ((0, 0), (0, 0), (1, 1), (1, 1)), mode="reflect")
    y = lax.conv_general_dilated(
        x_pad, weight_oihw, window_strides=(1, 1), padding="VALID",
        dimension_numbers=("NCHW", "OIHW", "NCHW"))
    return jnp.maximum(y, 0.0)


if __name__ == "__main__":
    key = jax.random.PRNGKey(0)
    kx, kw = jax.random.split(key)

    N, Cin, Cout, H, W = 2, 4, 8, 16, 16
    x = jax.random.normal(kx, (N, Cin, H, W), dtype=jnp.float32)
    # Deterministic synthetic weight, roughly Kaiming-scaled (Cout, Cin, 3, 3).
    fan_in = Cin * 3 * 3
    weight = jax.random.normal(kw, (Cout, Cin, 3, 3), dtype=jnp.float32) / jnp.sqrt(fan_in)

    out = mirror_padding_conv2d(x, weight)
    out = jax.block_until_ready(out)

    ref = _reference(x, weight)
    assert out.shape == (N, Cout, H, W)
    assert jnp.allclose(out, ref, atol=1e-5, rtol=1e-5), "mismatch vs reference"

    print("KERNEL_OK")
</pallas_src>

<mosaic_0001>
module attributes {stable_mosaic.version = 11 : i64} {
  func.func @mirror_conv_relu_kernel(%arg0: i32, %arg1: memref<1x4x256xf32, #tpu.memory_space<vmem>>, %arg2: memref<36x8xf32, #tpu.memory_space<vmem>>, %arg3: memref<1x8x256xf32, #tpu.memory_space<vmem>>, %arg4: memref<18x18x4xf32, #tpu.memory_space<vmem>>, %arg5: memref<16x16x36xf32, #tpu.memory_space<vmem>>) attributes {dimension_semantics = [#tpu.dimension_semantics<parallel>], iteration_bounds = array<i64: 2>, scalar_prefetch = 0 : i64, scratch_operands = 2 : i64, tpu.core_type = #tpu.core_type<tc>, window_params = [{transform_indices = @transform_0, window_bounds = array<i64: 1, 4, 256>}, {pipeline_mode = #tpu.pipeline_mode<synchronous>, transform_indices = @transform_1, window_bounds = array<i64: 36, 8>}, {transform_indices = @transform_2, window_bounds = array<i64: 1, 8, 256>}]} {
    %c0 = arith.constant 0 : index
    %c0_0 = arith.constant 0 : index
    %c0_1 = arith.constant 0 : index
    %0 = vector.load %arg1[%c0, %c0_0, %c0_1] : memref<1x4x256xf32, #tpu.memory_space<vmem>>, vector<1x4x256xf32>
    %1 = vector.shape_cast %0 : vector<1x4x256xf32> to vector<4x256xf32>
    %2 = tpu.transpose %1, [1, 0] : vector<4x256xf32> -> vector<256x4xf32>
    %3 = vector.shape_cast %2 : vector<256x4xf32> to vector<16x16x4xf32>
    %c1 = arith.constant 1 : index
    %c1_2 = arith.constant 1 : index
    %c0_3 = arith.constant 0 : index
    %4 = vector.load %arg4[%c1, %c1_2, %c0_3] : memref<18x18x4xf32, #tpu.memory_space<vmem>>, vector<16x16x4xf32>
    tpu.vector_store %arg4[%c1, %c1_2, %c0_3], %3 {strides = array<i32>} : memref<18x18x4xf32, #tpu.memory_space<vmem>>, vector<16x16x4xf32>,
    %5 = vector.extract_strided_slice %3 {offsets = [1, 0, 0], sizes = [1, 16, 4], strides = [1, 1, 1]} : vector<16x16x4xf32> to vector<1x16x4xf32>
    %c0_4 = arith.constant 0 : index
    %c1_5 = arith.constant 1 : index
    %c0_6 = arith.constant 0 : index
    %6 = vector.load %arg4[%c0_4, %c1_5, %c0_6] : memref<18x18x4xf32, #tpu.memory_space<vmem>>, vector<1x16x4xf32>
    tpu.vector_store %arg4[%c0_4, %c1_5, %c0_6], %5 {strides = array<i32>} : memref<18x18x4xf32, #tpu.memory_space<vmem>>, vector<1x16x4xf32>,
    %7 = vector.extract_strided_slice %3 {offsets = [14, 0, 0], sizes = [1, 16, 4], strides = [1, 1, 1]} : vector<16x16x4xf32> to vector<1x16x4xf32>
    %c17 = arith.constant 17 : index
    %c1_7 = arith.constant 1 : index
    %c0_8 = arith.constant 0 : index
    %8 = vector.load %arg4[%c17, %c1_7, %c0_8] : memref<18x18x4xf32, #tpu.memory_space<vmem>>, vector<1x16x4xf32>
    tpu.vector_store %arg4[%c17, %c1_7, %c0_8], %7 {strides = array<i32>} : memref<18x18x4xf32, #tpu.memory_space<vmem>>, vector<1x16x4xf32>,
    %c0_9 = arith.constant 0 : index
    %c2 = arith.constant 2 : index
    %c0_10 = arith.constant 0 : index
    %9 = vector.load %arg4[%c0_9, %c2, %c0_10] : memref<18x18x4xf32, #tpu.memory_space<vmem>>, vector<18x1x4xf32>
    %c0_11 = arith.constant 0 : index
    %c0_12 = arith.constant 0 : index
    %c0_13 = arith.constant 0 : index
    %10 = vector.load %arg4[%c0_11, %c0_12, %c0_13] : memref<18x18x4xf32, #tpu.memory_space<vmem>>, vector<18x1x4xf32>
    tpu.vector_store %arg4[%c0_11, %c0_12, %c0_13], %9 {strides = array<i32>} : memref<18x18x4xf32, #tpu.memory_space<vmem>>, vector<18x1x4xf32>,
    %c0_14 = arith.constant 0 : index
    %c15 = arith.constant 15 : index
    %c0_15 = arith.constant 0 : index
    %11 = vector.load %arg4[%c0_14, %c15, %c0_15] : memref<18x18x4xf32, #tpu.memory_space<vmem>>, vector<18x1x4xf32>
    %c0_16 = arith.constant 0 : index
    %c17_17 = arith.constant 17 : index
    %c0_18 = arith.constant 0 : index
    %12 = vector.load %arg4[%c0_16, %c17_17, %c0_18] : memref<18x18x4xf32, #tpu.memory_space<vmem>>, vector<18x1x4xf32>
    tpu.vector_store %arg4[%c0_16, %c17_17, %c0_18], %11 {strides = array<i32>} : memref<18x18x4xf32, #tpu.memory_space<vmem>>, vector<18x1x4xf32>,
    %c0_19 = arith.constant 0 : index
    %c0_20 = arith.constant 0 : index
    %c0_21 = arith.constant 0 : index
    %13 = vector.load %arg4[%c0_19, %c0_20, %c0_21] : memref<18x18x4xf32, #tpu.memory_space<vmem>>, vector<16x16x4xf32>
    %c0_22 = arith.constant 0 : index
    %c0_23 = arith.constant 0 : index
    %c0_24 = arith.constant 0 : index
    %14 = vector.load %arg5[%c0_22, %c0_23, %c0_24] : memref<16x16x36xf32, #tpu.memory_space<vmem>>, vector<16x16x4xf32>
    tpu.vector_store %arg5[%c0_22, %c0_23, %c0_24], %13 {strides = array<i32>} : memref<16x16x36xf32, #tpu.memory_space<vmem>>, vector<16x16x4xf32>,
    %c0_25 = arith.constant 0 : index
    %c1_26 = arith.constant 1 : index
    %c0_27 = arith.constant 0 : index
    %15 = vector.load %arg4[%c0_25, %c1_26, %c0_27] : memref<18x18x4xf32, #tpu.memory_space<vmem>>, vector<16x16x4xf32>
    %c0_28 = arith.constant 0 : index
    %c0_29 = arith.constant 0 : index
    %c4 = arith.constant 4 : index
    %16 = vector.load %arg5[%c0_28, %c0_29, %c4] : memref<16x16x36xf32, #tpu.memory_space<vmem>>, vector<16x16x4xf32>
    tpu.vector_store %arg5[%c0_28, %c0_29, %c4], %15 {strides = array<i32>} : memref<16x16x36xf32, #tpu.memory_space<vmem>>, vector<16x16x4xf32>,
    %c0_30 = arith.constant 0 : index
    %c2_31 = arith.constant 2 : index
    %c0_32 = arith.constant 0 : index
    %17 = vector.load %arg4[%c0_30, %c2_31, %c0_32] : memref<18x18x4xf32, #tpu.memory_space<vmem>>, vector<16x16x4xf32>
    %c0_33 = arith.constant 0 : index
    %c0_34 = arith.constant 0 : index
    %c8 = arith.constant 8 : index
    %18 = vector.load %arg5[%c0_33, %c0_34, %c8] : memref<16x16x36xf32, #tpu.memory_space<vmem>>, vector<16x16x4xf32>
    tpu.vector_store %arg5[%c0_33, %c0_34, %c8], %17 {strides = array<i32>} : memref<16x16x36xf32, #tpu.memory_space<vmem>>, vector<16x16x4xf32>,
    %c1_35 = arith.constant 1 : index
    %c0_36 = arith.constant 0 : index
    %c0_37 = arith.constant 0 : index
    %19 = vector.load %arg4[%c1_35, %c0_36, %c0_37] : memref<18x18x4xf32, #tpu.memory_space<vmem>>, vector<16x16x4xf32>
    %c0_38 = arith.constant 0 : index
    %c0_39 = arith.constant 0 : index
    %c12 = arith.constant 12 : index
    %20 = vector.load %arg5[%c0_38, %c0_39, %c12] : memref<16x16x36xf32, #tpu.memory_space<vmem>>, vector<16x16x4xf32>
    tpu.vector_store %arg5[%c0_38, %c0_39, %c12], %19 {strides = array<i32>} : memref<16x16x36xf32, #tpu.memory_space<vmem>>, vector<16x16x4xf32>,
    %c1_40 = arith.constant 1 : index
    %c1_41 = arith.constant 1 : index
    %c0_42 = arith.constant 0 : index
    %21 = vector.load %arg4[%c1_40, %c1_41, %c0_42] : memref<18x18x4xf32, #tpu.memory_space<vmem>>, vector<16x16x4xf32>
    %c0_43 = arith.constant 0 : index
    %c0_44 = arith.constant 0 : index
    %c16 = arith.constant 16 : index
    %22 = vector.load %arg5[%c0_43, %c0_44, %c16] : memref<16x16x36xf32, #tpu.memory_space<vmem>>, vector<16x16x4xf32>
    tpu.vector_store %arg5[%c0_43, %c0_44, %c16], %21 {strides = array<i32>} : memref<16x16x36xf32, #tpu.memory_space<vmem>>, vector<16x16x4xf32>,
    %c1_45 = arith.constant 1 : index
    %c2_46 = arith.constant 2 : index
    %c0_47 = arith.constant 0 : index
    %23 = vector.load %arg4[%c1_45, %c2_46, %c0_47] : memref<18x18x4xf32, #tpu.memory_space<vmem>>, vector<16x16x4xf32>
    %c0_48 = arith.constant 0 : index
    %c0_49 = arith.constant 0 : index
    %c20 = arith.constant 20 : index
    %24 = vector.load %arg5[%c0_48, %c0_49, %c20] : memref<16x16x36xf32, #tpu.memory_space<vmem>>, vector<16x16x4xf32>
    tpu.vector_store %arg5[%c0_48, %c0_49, %c20], %23 {strides = array<i32>} : memref<16x16x36xf32, #tpu.memory_space<vmem>>, vector<16x16x4xf32>,
    %c2_50 = arith.constant 2 : index
    %c0_51 = arith.constant 0 : index
    %c0_52 = arith.constant 0 : index
    %25 = vector.load %arg4[%c2_50, %c0_51, %c0_52] : memref<18x18x4xf32, #tpu.memory_space<vmem>>, vector<16x16x4xf32>
    %c0_53 = arith.constant 0 : index
    %c0_54 = arith.constant 0 : index
    %c24 = arith.constant 24 : index
    %26 = vector.load %arg5[%c0_53, %c0_54, %c24] : memref<16x16x36xf32, #tpu.memory_space<vmem>>, vector<16x16x4xf32>
    tpu.vector_store %arg5[%c0_53, %c0_54, %c24], %25 {strides = array<i32>} : memref<16x16x36xf32, #tpu.memory_space<vmem>>, vector<16x16x4xf32>,
    %c2_55 = arith.constant 2 : index
    %c1_56 = arith.constant 1 : index
    %c0_57 = arith.constant 0 : index
    %27 = vector.load %arg4[%c2_55, %c1_56, %c0_57] : memref<18x18x4xf32, #tpu.memory_space<vmem>>, vector<16x16x4xf32>
    %c0_58 = arith.constant 0 : index
    %c0_59 = arith.constant 0 : index
    %c28 = arith.constant 28 : index
    %28 = vector.load %arg5[%c0_58, %c0_59, %c28] : memref<16x16x36xf32, #tpu.memory_space<vmem>>, vector<16x16x4xf32>
    tpu.vector_store %arg5[%c0_58, %c0_59, %c28], %27 {strides = array<i32>} : memref<16x16x36xf32, #tpu.memory_space<vmem>>, vector<16x16x4xf32>,
    %c2_60 = arith.constant 2 : index
    %c2_61 = arith.constant 2 : index
    %c0_62 = arith.constant 0 : index
    %29 = vector.load %arg4[%c2_60, %c2_61, %c0_62] : memref<18x18x4xf32, #tpu.memory_space<vmem>>, vector<16x16x4xf32>
    %c0_63 = arith.constant 0 : index
    %c0_64 = arith.constant 0 : index
    %c32 = arith.constant 32 : index
    %30 = vector.load %arg5[%c0_63, %c0_64, %c32] : memref<16x16x36xf32, #tpu.memory_space<vmem>>, vector<16x16x4xf32>
    tpu.vector_store %arg5[%c0_63, %c0_64, %c32], %29 {strides = array<i32>} : memref<16x16x36xf32, #tpu.memory_space<vmem>>, vector<16x16x4xf32>,
    %c0_65 = arith.constant 0 : index
    %c0_66 = arith.constant 0 : index
    %c0_67 = arith.constant 0 : index
    %31 = vector.load %arg5[%c0_65, %c0_66, %c0_67] : memref<16x16x36xf32, #tpu.memory_space<vmem>>, vector<16x16x36xf32>
    %32 = vector.shape_cast %31 : vector<16x16x36xf32> to vector<256x36xf32>
    %c0_68 = arith.constant 0 : index
    %c0_69 = arith.constant 0 : index
    %33 = vector.load %arg2[%c0_68, %c0_69] : memref<36x8xf32, #tpu.memory_space<vmem>>, vector<36x8xf32>
    %cst = arith.constant dense<0.000000e+00> : vector<256x8xf32>
    %34 = tpu.matmul %32, %33, %cst {dimension_numbers = #tpu.dot_dimension_numbers<[1], [0], [0], [1], [0, 0, 1, 1], [], []>} : vector<256x36xf32>, vector<36x8xf32>, vector<256x8xf32> -> vector<256x8xf32>
    %cst_70 = arith.constant 0.000000e+00 : f32
    %35 = vector.broadcast %cst_70 : f32 to vector<256x8xf32>
    %36 = arith.maximumf %34, %35 : vector<256x8xf32>
    %37 = tpu.transpose %36, [1, 0] : vector<256x8xf32> -> vector<8x256xf32>
    %c0_71 = arith.constant 0 : index
    %c0_72 = arith.constant 0 : index
    %c0_73 = arith.constant 0 : index
    %38 = vector.load %arg3[%c0_71, %c0_72, %c0_73] : memref<1x8x256xf32, #tpu.memory_space<vmem>>, vector<1x8x256xf32>
    %39 = vector.shape_cast %38 : vector<1x8x256xf32> to vector<8x256xf32>
    %40 = vector.shape_cast %37 : vector<8x256xf32> to vector<1x8x256xf32>
    tpu.vector_store %arg3[%c0_71, %c0_72, %c0_73], %40 {strides = array<i32>} : memref<1x8x256xf32, #tpu.memory_space<vmem>>, vector<1x8x256xf32>,
    return
  }
  func.func @transform_0(%arg0: i32) -> (i32, i32, i32) {
    %c0_i32 = arith.constant 0 : i32
    %c0_i32_0 = arith.constant 0 : i32
    %c0_i32_1 = arith.constant 0 : i32
    return %arg0, %c0_i32, %c0_i32_0 : i32, i32, i32
  }
  func.func @transform_1(%arg0: i32) -> (i32, i32) {
    %c0_i32 = arith.constant 0 : i32
    %c0_i32_0 = arith.constant 0 : i32
    %c0_i32_1 = arith.constant 0 : i32
    return %c0_i32, %c0_i32_0 : i32, i32
  }
  func.func @transform_2(%arg0: i32) -> (i32, i32, i32) {
    %c0_i32 = arith.constant 0 : i32
    %c0_i32_0 = arith.constant 0 : i32
    %c0_i32_1 = arith.constant 0 : i32
    return %arg0, %c0_i32, %c0_i32_0 : i32, i32, i32
  }
}

</mosaic_0001>

<llo_original>
// kernel: tpu_custom_call.1
$region0: #{tpu_custom_call.1}
  #allocation0 [shape = 'u32[]', space=smem, size = 0x4, offset = 0x4, fixed_abs, tag = 'smem constant byte address 0x4 - core index']
  #allocation1 [shape = 'u32[72,128]{1,0:T(1,128)}', space=vmem, size = 0x9000, scoped, tag = 'internal scratch']
  #allocation2 [shape = 'f32[18,18,4]{2,1,0:T(8,128)}', space=vmem, size = 0x36000, scoped, tag = 'scratch operand']
  #allocation3 [shape = 'f32[16,16,36]{2,1,0:T(8,128)}', space=vmem, size = 0x20000, scoped, tag = 'scratch operand']
  %s0 = inlined_call_operand.vmem [shape: f32[2,4,256], index: 0, kind: input, shape index: {}]
  %s1 = inlined_call_operand.vmem [shape: f32[36,8], index: 1, kind: input, shape index: {}]
  %s2 = inlined_call_operand.hbm [shape: f32[2,8,256], index: 2, kind: output, shape index: {}]
  %s3 = sld [smem:[#allocation0]]
  $region41: #{tpu_custom_call.1} parent=0
    _
  %s5 = ssub.s32 1, %s3
  %s6 = scalar_select 0, %s5, %s3
  $region1: #{tpu_custom_call.1} parent=0
    #allocation4 [shape = 'u8[16384]{0}', space=vmem, size = 0x4000, scoped, tag = 'output window, operand 0']
    #allocation5 [shape = 's32[2]{0}', space=sflag, size = 0x8, scoped, tag = 'scoped memory for tpu_custom_call.1']
    %7 = vsyncpa [#allocation5], 0
    %s8 = scalar_lea.sflag [#allocation5], 1
    %9 = vsyncpa %s8, 0
    loop: start=0, step=1, limit=4
    $region2: #{tpu_custom_call.1} parent=1 // loop_pre_header
      _
    $region3: #{tpu_custom_call.1} parent=1 // loop_header
      %s11 = sphi 0, %s15
      %p12 = scmp.ge.s32.totalorder %s11, 4
      %s21 = sphi 0, %s23
      %s24 = sphi 0, %s21
      %s25 = sphi 0, %s24
      %s41 = sphi 0, %s25
      %s45 = sphi 0, %s45
      %s47 = sphi 0, %s45
      %s48 = sphi 0, %s47
      %s62 = sphi 0, %s48
      %s68 = sphi 0, %s70
      %s71 = sphi 0, %s68
      %s72 = sphi 0, %s71
      %s88 = sphi 0, %s72
    $region4: #{tpu_custom_call.1} parent=1 // loop_header_branch
      %14 = sbr.rel (%p12) target = $region8
    $region5: #{tpu_custom_call.1} parent=1 // loop_body
      %s16 = ssub.s32 %s11, 1
      %s17 = ssub.s32 %s11, 2
      %s18 = sadd.s32 %s11, 1
      %s19 = ssub.s32 %s11, %s18
      %p20 = scmp.eq.s32.totalorder %s19, 0
      %s22 = sadd.s32 %s21, 1
      %s23 = scalar_select %p20, %s21, %s22
      %p26 = pneg %p20
      %p27 = scmp.eq.s32.totalorder %s11, 1
      %p28 = por %p26, %p27
      %p29 = scmp.ne.s32.totalorder %s21, %s24
      %p30 = scmp.eq.s32.totalorder %s11, 0
      %p31 = por %p29, %p30
      %p32 = scmp.ne.s32.totalorder %s21, %s24
      %p33 = scmp.eq.s32.totalorder %s16, 1
      %p34 = por %p32, %p33
      %p35 = scmp.ne.s32.totalorder %s24, %s25
      %p36 = scmp.eq.s32.totalorder %s16, 0
      %p37 = por %p35, %p36
      %p38 = scmp.ne.s32.totalorder %s24, %s25
      %p39 = scmp.eq.s32.totalorder %s17, 1
      %p40 = por %p38, %p39
      %p42 = scmp.ne.s32.totalorder %s25, %s41
      %p43 = scmp.eq.s32.totalorder %s17, 0
      %p44 = por %p42, %p43
      %s46 = sadd.s32 %s45, 1
      %p49 = scmp.eq.s32.totalorder %s11, 1
      %p50 = scmp.ne.s32.totalorder %s45, %s47
      %p51 = scmp.eq.s32.totalorder %s11, 0
      %p52 = por %p50, %p51
      %p53 = scmp.ne.s32.totalorder %s45, %s47
      %p54 = scmp.eq.s32.totalorder %s16, 1
      %p55 = por %p53, %p54
      %p56 = scmp.ne.s32.totalorder %s47, %s48
      %p57 = scmp.eq.s32.totalorder %s16, 0
      %p58 = por %p56, %p57
      %p59 = scmp.ne.s32.totalorder %s47, %s48
      %p60 = scmp.eq.s32.totalorder %s17, 1
      %p61 = por %p59, %p60
      %p63 = scmp.ne.s32.totalorder %s48, %s62
      %p64 = scmp.eq.s32.totalorder %s17, 0
      %p65 = por %p63, %p64
      %s66 = ssub.s32 %s11, %s18
      %p67 = scmp.eq.s32.totalorder %s66, 0
      %s69 = sadd.s32 %s68, 1
      %s70 = scalar_select %p67, %s68, %s69
      %p73 = pneg %p67
      %p74 = scmp.eq.s32.totalorder %s11, 1
      %p75 = por %p73, %p74
      %p76 = scmp.ne.s32.totalorder %s68, %s71
      %p77 = scmp.eq.s32.totalorder %s11, 0
      %p78 = por %p76, %p77
      %p79 = scmp.ne.s32.totalorder %s68, %s71
      %p80 = scmp.eq.s32.totalorder %s16, 1
      %p81 = por %p79, %p80
      %p82 = scmp.ne.s32.totalorder %s71, %s72
      %p83 = scmp.eq.s32.totalorder %s16, 0
      %p84 = por %p82, %p83
      %p85 = scmp.ne.s32.totalorder %s71, %s72
      %p86 = scmp.eq.s32.totalorder %s17, 1
      %p87 = por %p85, %p86
      %p89 = scmp.ne.s32.totalorder %s72, %s88
      %p90 = scmp.eq.s32.totalorder %s17, 0
      %p91 = por %p89, %p90
      %p92 = scmp.le.s32.totalorder 1, %s11
      %p93 = scmp.lt.s32.totalorder %s11, 3
      %p94 = pnand %p92, %p93
      %p95 = pneg %p94
      // Predicated region
      $region9: #{tpu_custom_call.1} parent=5 // pred_check
        _
      $region10: #{tpu_custom_call.1} parent=5 // pred_check_branch
        %97 = sbr.rel (%p94) target = $region12
      $region11: #{tpu_custom_call.1} parent=5 // pred_region
        %s98 = ssub.s32 %s11, 1
        // Predicated region
        $region13: #{tpu_custom_call.1} parent=11 // pred_check
          %p99 = pneg %p58
        $region14: #{tpu_custom_call.1} parent=11 // pred_check_branch
          %101 = sbr.rel (%p99) target = $region16
        $region15: #{tpu_custom_call.1} parent=11 // pred_region
          _
        $region16: #{tpu_custom_call.1} parent=11 // pred_fallthru
          _
      $region12: #{tpu_custom_call.1} parent=5 // pred_fallthru
        _
      %p102 = scmp.lt.s32.totalorder %s11, 2
      // Predicated region
      $region17: #{tpu_custom_call.1} parent=5 // pred_check
        %p103 = pneg %p102
      $region18: #{tpu_custom_call.1} parent=5 // pred_check_branch
        %105 = sbr.rel (%p103) target = $region20
      $region19: #{tpu_custom_call.1} parent=5 // pred_region
        // Predicated region
        $region21: #{tpu_custom_call.1} parent=19 // pred_check
          %p106 = pneg %p31
        $region22: #{tpu_custom_call.1} parent=19 // pred_check_branch
          %108 = sbr.rel (%p106) target = $region24
        $region23: #{tpu_custom_call.1} parent=19 // pred_region
          %p109 = scmp.lt.s32.totalorder %s11, 1
          %s110 = scalar_select %p109, %s11, 1
          %s111 = smul.addr %s110, 2
          %s112 = smul.addr %s111, 4
          %s113 = scalar_lea.vmem %s0, %s112
        $region24: #{tpu_custom_call.1} parent=19 // pred_fallthru
          _
      $region20: #{tpu_custom_call.1} parent=5 // pred_fallthru
        _
      %p114 = scmp.le.s32.totalorder 1, %s11
      %p115 = scmp.lt.s32.totalorder %s11, 3
      %p116 = pnand %p114, %p115
      %p117 = pneg %p116
      // Predicated region
      $region25: #{tpu_custom_call.1} parent=5 // pred_check
        _
      $region26: #{tpu_custom_call.1} parent=5 // pred_check_branch
        %119 = sbr.rel (%p116) target = $region28
      $region27: #{tpu_custom_call.1} parent=5 // pred_region
        %s120 = ssub.s32 %s11, 1
        %p121 = scmp.lt.s32.totalorder %s16, 1
        %s122 = scalar_select %p121, %s16, 1
        %s123 = smul.addr %s122, 2
        %s124 = smul.addr %s123, 4
        %s125 = scalar_lea.vmem %s0, %s124
        %p126 = pneg %p37
        %p127 = pneg %p34
        %p128 = pneg %p58
        %p129 = pneg %p55
        %p130 = pneg %p84
        %p131 = pneg %p81
        %s132 = sand.u32 %s71, 1
        %s133 = scalar_lea.sflag [#allocation5], %s132
        %s134 = sand.u32 %s71, 1
        %s135 = smul.addr %s134, 16
        %s136 = scalar_lea.vmem [#allocation4], %s135
        %p137 = scmp.lt.s32.totalorder %s16, 1
        %s138 = scalar_select %p137, %s16, 1
        %s139 = smul.addr %s138, 2
        %s140 = smul.addr %s139, 4
        %s141 = scalar_lea.vmem %s0, %s140
        %v142 = vld [vmem:[%s141] sm:$0xff]
        %144 = vst [vmem:[#allocation1] ss:$2 sm:$0xff] %v142
        %v145 = vld.sshfl [vmem:[#allocation1] sm:$0xff pattern:$0x75316420]
        %v146 = vld.sshfl [vmem:[#allocation1 + $0x8] sm:$0xff pattern:$0x75316420]
        %149 = vxpose.xlu0.b32.start [1/16] %v145, 128
        %150 = vxpose.xlu0.b32.cont [2/16] 0.0, 128
        %151 = vxpose.xlu0.b32.cont [3/16] 0.0, 128
        %152 = vxpose.xlu0.b32.cont [4/16] 0.0, 128
        %153 = vxpose.xlu0.b32.cont [5/16] 0.0, 128
        %154 = vxpose.xlu0.b32.cont [6/16] 0.0, 128
        %155 = vxpose.xlu0.b32.cont [7/16] 0.0, 128
        %156 = vxpose.xlu0.b32.cont [8/16] 0.0, 128
        %157 = vxpose.xlu0.b32.cont [9/16] 0.0, 128
        %158 = vxpose.xlu0.b32.cont [10/16] 0.0, 128
        %159 = vxpose.xlu0.b32.cont [11/16] 0.0, 128
        %160 = vxpose.xlu0.b32.cont [12/16] 0.0, 128
        %161 = vxpose.xlu0.b32.cont [13/16] 0.0, 128
        %162 = vxpose.xlu0.b32.cont [14/16] 0.0, 128
        %163 = vxpose.xlu0.b32.cont [15/16] 0.0, 128
        %164 = vxpose.xlu0.b32.end [16/16] 0.0, 128
        %v165 = vpop.trf.xlu0
        %v166 = vpop.trf.xlu0
        %v167 = vpop.trf.xlu0
        %v168 = vpop.trf.xlu0
        %v169 = vpop.trf.xlu0
        %v170 = vpop.trf.xlu0
        %v171 = vpop.trf.xlu0
        %v172 = vpop.trf.xlu0
        %v173 = vpop.trf.xlu0
        %v174 = vpop.trf.xlu0
        %v175 = vpop.trf.xlu0
        %v176 = vpop.trf.xlu0
        %v177 = vpop.trf.xlu0
        %v178 = vpop.trf.xlu0
        %v179 = vpop.trf.xlu0
        %v180 = vpop.trf.xlu0
        %181 = vxpose.xlu0.b32.start [1/16] %v146, 128
        %182 = vxpose.xlu0.b32.cont [2/16] 0.0, 128
        %183 = vxpose.xlu0.b32.cont [3/16] 0.0, 128
        %184 = vxpose.xlu0.b32.cont [4/16] 0.0, 128
        %185 = vxpose.xlu0.b32.cont [5/16] 0.0, 128
        %186 = vxpose.xlu0.b32.cont [6/16] 0.0, 128
        %187 = vxpose.xlu0.b32.cont [7/16] 0.0, 128
        %188 = vxpose.xlu0.b32.cont [8/16] 0.0, 128
        %189 = vxpose.xlu0.b32.cont [9/16] 0.0, 128
        %190 = vxpose.xlu0.b32.cont [10/16] 0.0, 128
        %191 = vxpose.xlu0.b32.cont [11/16] 0.0, 128
        %192 = vxpose.xlu0.b32.cont [12/16] 0.0, 128
        %193 = vxpose.xlu0.b32.cont [13/16] 0.0, 128
        %194 = vxpose.xlu0.b32.cont [14/16] 0.0, 128
        %195 = vxpose.xlu0.b32.cont [15/16] 0.0, 128
        %196 = vxpose.xlu0.b32.end [16/16] 0.0, 128
        %v197 = vpop.trf.xlu0
        %v198 = vpop.trf.xlu0
        %v199 = vpop.trf.xlu0
        %v200 = vpop.trf.xlu0
        %v201 = vpop.trf.xlu0
        %v202 = vpop.trf.xlu0
        %v203 = vpop.trf.xlu0
        %v204 = vpop.trf.xlu0
        %v205 = vpop.trf.xlu0
        %v206 = vpop.trf.xlu0
        %v207 = vpop.trf.xlu0
        %v208 = vpop.trf.xlu0
        %v209 = vpop.trf.xlu0
        %v210 = vpop.trf.xlu0
        %v211 = vpop.trf.xlu0
        %v212 = vpop.trf.xlu0
        %s213 = scalar_lea.vmem [#allocation2], 24
        %vm214 = vcmask 31744
        %215 = vst.msk [vmem:[%s213 + $0x1] sm:$0xff] %vm214, %v165
        %216 = vst.msk [vmem:[%s213 + $0x9] sm:$0xff] %vm214, %v166
        %217 = vst.msk [vmem:[%s213 + $0x19] sm:$0xff] %vm214, %v167
        %218 = vst.msk [vmem:[%s213 + $0x21] sm:$0xff] %vm214, %v168
        %219 = vst.msk [vmem:[%s213 + $0x31] sm:$0xff] %vm214, %v169
        %220 = vst.msk [vmem:[%s213 + $0x39] sm:$0xff] %vm214, %v170
        %221 = vst.msk [vmem:[%s213 + $0x49] sm:$0xff] %vm214, %v171
        %222 = vst.msk [vmem:[%s213 + $0x51] sm:$0xff] %vm214, %v172
        %223 = vst.msk [vmem:[%s213 + $0x61] sm:$0xff] %vm214, %v173
        %224 = vst.msk [vmem:[%s213 + $0x69] sm:$0xff] %vm214, %v174
        %225 = vst.msk [vmem:[%s213 + $0x79] sm:$0xff] %vm214, %v175
        %226 = vst.msk [vmem:[%s213 + $0x81] sm:$0xff] %vm214, %v176
        %227 = vst.msk [vmem:[%s213 + $0x91] sm:$0xff] %vm214, %v177
        %228 = vst.msk [vmem:[%s213 + $0x99] sm:$0xff] %vm214, %v178
        %229 = vst.msk [vmem:[%s213 + $0xa9] sm:$0xff] %vm214, %v179
        %230 = vst.msk [vmem:[%s213 + $0xb1] sm:$0xff] %vm214, %v180
        %231 = vst.msk [vmem:[%s213 + $0xc1] sm:$0xff] %vm214, %v197
        %232 = vst.msk [vmem:[%s213 + $0xc9] sm:$0xff] %vm214, %v198
        %233 = vst.msk [vmem:[%s213 + $0xd9] sm:$0xff] %vm214, %v199
        %234 = vst.msk [vmem:[%s213 + $0xe1] sm:$0xff] %vm214, %v200
        %235 = vst.msk [vmem:[%s213 + $0xf1] sm:$0xff] %vm214, %v201
        %236 = vst.msk [vmem:[%s213 + $0xf9] sm:$0xff] %vm214, %v202
        %237 = vst.msk [vmem:[%s213 + $0x109] sm:$0xff] %vm214, %v203
        %238 = vst.msk [vmem:[%s213 + $0x111] sm:$0xff] %vm214, %v204
        %239 = vst.msk [vmem:[%s213 + $0x121] sm:$0xff] %vm214, %v205
        %240 = vst.msk [vmem:[%s213 + $0x129] sm:$0xff] %vm214, %v206
        %241 = vst.msk [vmem:[%s213 + $0x139] sm:$0xff] %vm214, %v207
        %242 = vst.msk [vmem:[%s213 + $0x141] sm:$0xff] %vm214, %v208
        %243 = vst.msk [vmem:[%s213 + $0x151] sm:$0xff] %vm214, %v209
        %244 = vst.msk [vmem:[%s213 + $0x159] sm:$0xff] %vm214, %v210
        %245 = vst.msk [vmem:[%s213 + $0x169] sm:$0xff] %vm214, %v211
        %246 = vst.msk [vmem:[%s213 + $0x171] sm:$0xff] %vm214, %v212
        %247 = vst.msk [vmem:[#allocation2 + $0x1] sm:$0xff] %vm214, %v167
        %248 = vst.msk [vmem:[#allocation2 + $0x9] sm:$0xff] %vm214, %v168
        %s249 = scalar_lea.vmem [#allocation2], 408
        %250 = vst.msk [vmem:[%s249 + $0x1] sm:$0xff] %vm214, %v209
        %251 = vst.msk [vmem:[%s249 + $0x9] sm:$0xff] %vm214, %v210
        %v252 = vld [vmem:[#allocation2 + $0x2] sm:$0x1]
        %v253 = vld [vmem:[#allocation2 + $0x1a] sm:$0x1]
        %v254 = vld [vmem:[#allocation2 + $0x32] sm:$0x1]
        %v255 = vld [vmem:[#allocation2 + $0x4a] sm:$0x1]
        %v256 = vld [vmem:[#allocation2 + $0x62] sm:$0x1]
        %v257 = vld [vmem:[#allocation2 + $0x7a] sm:$0x1]
        %v258 = vld [vmem:[#allocation2 + $0x92] sm:$0x1]
        %v259 = vld [vmem:[#allocation2 + $0xaa] sm:$0x1]
        %v260 = vld [vmem:[#allocation2 + $0xc2] sm:$0x1]
        %v261 = vld [vmem:[#allocation2 + $0xda] sm:$0x1]
        %v262 = vld [vmem:[#allocation2 + $0xf2] sm:$0x1]
        %v263 = vld [vmem:[#allocation2 + $0x10a] sm:$0x1]
        %v264 = vld [vmem:[#allocation2 + $0x122] sm:$0x1]
        %v265 = vld [vmem:[#allocation2 + $0x13a] sm:$0x1]
        %v266 = vld [vmem:[#allocation2 + $0x152] sm:$0x1]
        %v267 = vld [vmem:[#allocation2 + $0x16a] sm:$0x1]
        %v268 = vld [vmem:[#allocation2 + $0x182] sm:$0x1]
        %v269 = vld [vmem:[#allocation2 + $0x19a] sm:$0x1]
        %vm270 = vcmask 24576
        %271 = vst.msk [vmem:[#allocation2] sm:$0x1] %vm270, %v252
        %272 = vst.msk [vmem:[#allocation2 + $0x18] sm:$0x1] %vm270, %v253
        %273 = vst.msk [vmem:[#allocation2 + $0x30] sm:$0x1] %vm270, %v254
        %274 = vst.msk [vmem:[#allocation2 + $0x48] sm:$0x1] %vm270, %v255
        %275 = vst.msk [vmem:[#allocation2 + $0x60] sm:$0x1] %vm270, %v256
        %276 = vst.msk [vmem:[#allocation2 + $0x78] sm:$0x1] %vm270, %v257
        %277 = vst.msk [vmem:[#allocation2 + $0x90] sm:$0x1] %vm270, %v258
        %278 = vst.msk [vmem:[#allocation2 + $0xa8] sm:$0x1] %vm270, %v259
        %279 = vst.msk [vmem:[#allocation2 + $0xc0] sm:$0x1] %vm270, %v260
        %280 = vst.msk [vmem:[#allocation2 + $0xd8] sm:$0x1] %vm270, %v261
        %281 = vst.msk [vmem:[#allocation2 + $0xf0] sm:$0x1] %vm270, %v262
        %282 = vst.msk [vmem:[#allocation2 + $0x108] sm:$0x1] %vm270, %v263
        %283 = vst.msk [vmem:[#allocation2 + $0x120] sm:$0x1] %vm270, %v264
        %284 = vst.msk [vmem:[#allocation2 + $0x138] sm:$0x1] %vm270, %v265
        %285 = vst.msk [vmem:[#allocation2 + $0x150] sm:$0x1] %vm270, %v266
        %286 = vst.msk [vmem:[#allocation2 + $0x168] sm:$0x1] %vm270, %v267
        %287 = vst.msk [vmem:[#allocation2 + $0x180] sm:$0x1] %vm270, %v268
        %288 = vst.msk [vmem:[#allocation2 + $0x198] sm:$0x1] %vm270, %v269
        %v289 = vld [vmem:[#allocation2 + $0xf] sm:$0x1]
        %v290 = vld [vmem:[#allocation2 + $0x27] sm:$0x1]
        %v291 = vld [vmem:[#allocation2 + $0x3f] sm:$0x1]
        %v292 = vld [vmem:[#allocation2 + $0x57] sm:$0x1]
        %v293 = vld [vmem:[#allocation2 + $0x6f] sm:$0x1]
        %v294 = vld [vmem:[#allocation2 + $0x87] sm:$0x1]
        %v295 = vld [vmem:[#allocation2 + $0x9f] sm:$0x1]
        %v296 = vld [vmem:[#allocation2 + $0xb7] sm:$0x1]
        %v297 = vld [vmem:[#allocation2 + $0xcf] sm:$0x1]
        %v298 = vld [vmem:[#allocation2 + $0xe7] sm:$0x1]
        %v299 = vld [vmem:[#allocation2 + $0xff] sm:$0x1]
        %v300 = vld [vmem:[#allocation2 + $0x117] sm:$0x1]
        %v301 = vld [vmem:[#allocation2 + $0x12f] sm:$0x1]
        %v302 = vld [vmem:[#allocation2 + $0x147] sm:$0x1]
        %v303 = vld [vmem:[#allocation2 + $0x15f] sm:$0x1]
        %v304 = vld [vmem:[#allocation2 + $0x177] sm:$0x1]
        %v305 = vld [vmem:[#allocation2 + $0x18f] sm:$0x1]
        %v306 = vld [vmem:[#allocation2 + $0x1a7] sm:$0x1]
        %307 = vst.msk [vmem:[#allocation2 + $0x11] sm:$0x1] %vm270, %v289
        %308 = vst.msk [vmem:[#allocation2 + $0x29] sm:$0x1] %vm270, %v290
        %309 = vst.msk [vmem:[#allocation2 + $0x41] sm:$0x1] %vm270, %v291
        %310 = vst.msk [vmem:[#allocation2 + $0x59] sm:$0x1] %vm270, %v292
        %311 = vst.msk [vmem:[#allocation2 + $0x71] sm:$0x1] %vm270, %v293
        %312 = vst.msk [vmem:[#allocation2 + $0x89] sm:$0x1] %vm270, %v294
        %313 = vst.msk [vmem:[#allocation2 + $0xa1] sm:$0x1] %vm270, %v295
        %314 = vst.msk [vmem:[#allocation2 + $0xb9] sm:$0x1] %vm270, %v296
        %315 = vst.msk [vmem:[#allocation2 + $0xd1] sm:$0x1] %vm270, %v297
        %316 = vst.msk [vmem:[#allocation2 + $0xe9] sm:$0x1] %vm270, %v298
        %317 = vst.msk [vmem:[#allocation2 + $0x101] sm:$0x1] %vm270, %v299
        %318 = vst.msk [vmem:[#allocation2 + $0x119] sm:$0x1] %vm270, %v300
        %319 = vst.msk [vmem:[#allocation2 + $0x131] sm:$0x1] %vm270, %v301
        %320 = vst.msk [vmem:[#allocation2 + $0x149] sm:$0x1] %vm270, %v302
        %321 = vst.msk [vmem:[#allocation2 + $0x161] sm:$0x1] %vm270, %v303
        %322 = vst.msk [vmem:[#allocation2 + $0x179] sm:$0x1] %vm270, %v304
        %323 = vst.msk [vmem:[#allocation2 + $0x191] sm:$0x1] %vm270, %v305
        %324 = vst.msk [vmem:[#allocation2 + $0x1a9] sm:$0x1] %vm270, %v306
        %v325 = vld [vmem:[#allocation2] sm:$0xff]
        %v326 = vld [vmem:[#allocation2 + $0x8] sm:$0xff]
        %v327 = vld [vmem:[#allocation2 + $0x18] sm:$0xff]
        %v328 = vld [vmem:[#allocation2 + $0x20] sm:$0xff]
        %v329 = vld [vmem:[#allocation2 + $0x30] sm:$0xff]
        %v330 = vld [vmem:[#allocation2 + $0x38] sm:$0xff]
        %v331 = vld [vmem:[#allocation2 + $0x48] sm:$0xff]
        %v332 = vld [vmem:[#allocation2 + $0x50] sm:$0xff]
        %v333 = vld [vmem:[#allocation2 + $0x60] sm:$0xff]
        %v334 = vld [vmem:[#allocation2 + $0x68] sm:$0xff]
        %v335 = vld [vmem:[#allocation2 + $0x78] sm:$0xff]
        %v336 = vld [vmem:[#allocation2 + $0x80] sm:$0xff]
        %v337 = vld [vmem:[#allocation2 + $0x90] sm:$0xff]
        %v338 = vld [vmem:[#allocation2 + $0x98] sm:$0xff]
        %v339 = vld [vmem:[#allocation2 + $0xa8] sm:$0xff]
        %v340 = vld [vmem:[#allocation2 + $0xb0] sm:$0xff]
        %v341 = vld [vmem:[#allocation2 + $0xc0] sm:$0xff]
        %v342 = vld [vmem:[#allocation2 + $0xc8] sm:$0xff]
        %v343 = vld [vmem:[#allocation2 + $0xd8] sm:$0xff]
        %v344 = vld [vmem:[#allocation2 + $0xe0] sm:$0xff]
        %v345 = vld [vmem:[#allocation2 + $0xf0] sm:$0xff]
        %v346 = vld [vmem:[#allocation2 + $0xf8] sm:$0xff]
        %v347 = vld [vmem:[#allocation2 + $0x108] sm:$0xff]
        %v348 = vld [vmem:[#allocation2 + $0x110] sm:$0xff]
        %v349 = vld [vmem:[#allocation2 + $0x120] sm:$0xff]
        %v350 = vld [vmem:[#allocation2 + $0x128] sm:$0xff]
        %v351 = vld [vmem:[#allocation2 + $0x138] sm:$0xff]
        %v352 = vld [vmem:[#allocation2 + $0x140] sm:$0xff]
        %v353 = vld [vmem:[#allocation2 + $0x150] sm:$0xff]
        %v354 = vld [vmem:[#allocation2 + $0x158] sm:$0xff]
        %v355 = vld [vmem:[#allocation2 + $0x168] sm:$0xff]
        %v356 = vld [vmem:[#allocation2 + $0x170] sm:$0xff]
        %357 = vst.msk [vmem:[#allocation3] sm:$0xff] %vm214, %v325
        %358 = vst.msk [vmem:[#allocation3 + $0x8] sm:$0xff] %vm214, %v326
        %359 = vst.msk [vmem:[#allocation3 + $0x10] sm:$0xff] %vm214, %v327
        %360 = vst.msk [vmem:[#allocation3 + $0x18] sm:$0xff] %vm214, %v328
        %361 = vst.msk [vmem:[#allocation3 + $0x20] sm:$0xff] %vm214, %v329
        %362 = vst.msk [vmem:[#allocation3 + $0x28] sm:$0xff] %vm214, %v330
        %363 = vst.msk [vmem:[#allocation3 + $0x30] sm:$0xff] %vm214, %v331
        %364 = vst.msk [vmem:[#allocation3 + $0x38] sm:$0xff] %vm214, %v332
        %365 = vst.msk [vmem:[#allocation3 + $0x40] sm:$0xff] %vm214, %v333
        %366 = vst.msk [vmem:[#allocation3 + $0x48] sm:$0xff] %vm214, %v334
        %367 = vst.msk [vmem:[#allocation3 + $0x50] sm:$0xff] %vm214, %v335
        %368 = vst.msk [vmem:[#allocation3 + $0x58] sm:$0xff] %vm214, %v336
        %369 = vst.msk [vmem:[#allocation3 + $0x60] sm:$0xff] %vm214, %v337
        %370 = vst.msk [vmem:[#allocation3 + $0x68] sm:$0xff] %vm214, %v338
        %371 = vst.msk [vmem:[#allocation3 + $0x70] sm:$0xff] %vm214, %v339
        %372 = vst.msk [vmem:[#allocation3 + $0x78] sm:$0xff] %vm214, %v340
        %373 = vst.msk [vmem:[#allocation3 + $0x80] sm:$0xff] %vm214, %v341
        %374 = vst.msk [vmem:[#allocation3 + $0x88] sm:$0xff] %vm214, %v342
        %375 = vst.msk [vmem:[#allocation3 + $0x90] sm:$0xff] %vm214, %v343
        %376 = vst.msk [vmem:[#allocation3 + $0x98] sm:$0xff] %vm214, %v344
        %377 = vst.msk [vmem:[#allocation3 + $0xa0] sm:$0xff] %vm214, %v345
        %378 = vst.msk [vmem:[#allocation3 + $0xa8] sm:$0xff] %vm214, %v346
        %379 = vst.msk [vmem:[#allocation3 + $0xb0] sm:$0xff] %vm214, %v347
        %380 = vst.msk [vmem:[#allocation3 + $0xb8] sm:$0xff] %vm214, %v348
        %381 = vst.msk [vmem:[#allocation3 + $0xc0] sm:$0xff] %vm214, %v349
        %382 = vst.msk [vmem:[#allocation3 + $0xc8] sm:$0xff] %vm214, %v350
        %383 = vst.msk [vmem:[#allocation3 + $0xd0] sm:$0xff] %vm214, %v351
        %384 = vst.msk [vmem:[#allocation3 + $0xd8] sm:$0xff] %vm214, %v352
        %385 = vst.msk [vmem:[#allocation3 + $0xe0] sm:$0xff] %vm214, %v353
        %386 = vst.msk [vmem:[#allocation3 + $0xe8] sm:$0xff] %vm214, %v354
        %387 = vst.msk [vmem:[#allocation3 + $0xf0] sm:$0xff] %vm214, %v355
        %388 = vst.msk [vmem:[#allocation3 + $0xf8] sm:$0xff] %vm214, %v356
        %v389 = vld [vmem:[#allocation2 + $0x1] sm:$0xff]
        %v390 = vld [vmem:[#allocation2 + $0x9] sm:$0xff]
        %v391 = vld [vmem:[#allocation2 + $0x19] sm:$0xff]
        %v392 = vld [vmem:[#allocation2 + $0x21] sm:$0xff]
        %v393 = vld [vmem:[#allocation2 + $0x31] sm:$0xff]
        %v394 = vld [vmem:[#allocation2 + $0x39] sm:$0xff]
        %v395 = vld [vmem:[#allocation2 + $0x49] sm:$0xff]
        %v396 = vld [vmem:[#allocation2 + $0x51] sm:$0xff]
        %v397 = vld [vmem:[#allocation2 + $0x61] sm:$0xff]
        %v398 = vld [vmem:[#allocation2 + $0x69] sm:$0xff]
        %v399 = vld [vmem:[#allocation2 + $0x79] sm:$0xff]
        %v400 = vld [vmem:[#allocation2 + $0x81] sm:$0xff]
        %v401 = vld [vmem:[#allocation2 + $0x91] sm:$0xff]
        %v402 = vld [vmem:[#allocation2 + $0x99] sm:$0xff]
        %v403 = vld [vmem:[#allocation2 + $0xa9] sm:$0xff]
        %v404 = vld [vmem:[#allocation2 + $0xb1] sm:$0xff]
        %v405 = vld [vmem:[#allocation2 + $0xc1] sm:$0xff]
        %v406 = vld [vmem:[#allocation2 + $0xc9] sm:$0xff]
        %v407 = vld [vmem:[#allocation2 + $0xd9] sm:$0xff]
        %v408 = vld [vmem:[#allocation2 + $0xe1] sm:$0xff]
        %v409 = vld [vmem:[#allocation2 + $0xf1] sm:$0xff]
        %v410 = vld [vmem:[#allocation2 + $0xf9] sm:$0xff]
        %v411 = vld [vmem:[#allocation2 + $0x109] sm:$0xff]
        %v412 = vld [vmem:[#allocation2 + $0x111] sm:$0xff]
        %v413 = vld [vmem:[#allocation2 + $0x121] sm:$0xff]
        %v414 = vld [vmem:[#allocation2 + $0x129] sm:$0xff]
        %v415 = vld [vmem:[#allocation2 + $0x139] sm:$0xff]
        %v416 = vld [vmem:[#allocation2 + $0x141] sm:$0xff]
        %v417 = vld [vmem:[#allocation2 + $0x151] sm:$0xff]
        %v418 = vld [vmem:[#allocation2 + $0x159] sm:$0xff]
        %v419 = vld [vmem:[#allocation2 + $0x169] sm:$0xff]
        %v420 = vld [vmem:[#allocation2 + $0x171] sm:$0xff]
        %453 = vrot.lane.b32.xlu0 %v389, 4
        %v454 = vpop.permute.xlu0 %453
        %455 = vrot.lane.b32.xlu0 %v390, 4
        %v456 = vpop.permute.xlu0 %455
        %457 = vrot.lane.b32.xlu0 %v391, 4
        %v458 = vpop.permute.xlu0 %457
        %459 = vrot.lane.b32.xlu0 %v392, 4
        %v460 = vpop.permute.xlu0 %459
        %461 = vrot.lane.b32.xlu0 %v393, 4
        %v462 = vpop.permute.xlu0 %461
        %463 = vrot.lane.b32.xlu0 %v394, 4
        %v464 = vpop.permute.xlu0 %463
        %465 = vrot.lane.b32.xlu0 %v395, 4
        %v466 = vpop.permute.xlu0 %465
        %467 = vrot.lane.b32.xlu0 %v396, 4
        %v468 = vpop.permute.xlu0 %467
        %469 = vrot.lane.b32.xlu0 %v397, 4
        %v470 = vpop.permute.xlu0 %469
        %471 = vrot.lane.b32.xlu0 %v398, 4
        %v472 = vpop.permute.xlu0 %471
        %473 = vrot.lane.b32.xlu0 %v399, 4
        %v474 = vpop.permute.xlu0 %473
        %475 = vrot.lane.b32.xlu0 %v400, 4
        %v476 = vpop.permute.xlu0 %475
        %477 = vrot.lane.b32.xlu0 %v401, 4
        %v478 = vpop.permute.xlu0 %477
        %479 = vrot.lane.b32.xlu0 %v402, 4
        %v480 = vpop.permute.xlu0 %479
        %481 = vrot.lane.b32.xlu0 %v403, 4
        %v482 = vpop.permute.xlu0 %481
        %483 = vrot.lane.b32.xlu0 %v404, 4
        %v484 = vpop.permute.xlu0 %483
        %485 = vrot.lane.b32.xlu0 %v405, 4
        %v486 = vpop.permute.xlu0 %485
        %487 = vrot.lane.b32.xlu0 %v406, 4
        %v488 = vpop.permute.xlu0 %487
        %489 = vrot.lane.b32.xlu0 %v407, 4
        %v490 = vpop.permute.xlu0 %489
        %491 = vrot.lane.b32.xlu0 %v408, 4
        %v492 = vpop.permute.xlu0 %491
        %493 = vrot.lane.b32.xlu0 %v409, 4
        %v494 = vpop.permute.xlu0 %493
        %495 = vrot.lane.b32.xlu0 %v410, 4
        %v496 = vpop.permute.xlu0 %495
        %497 = vrot.lane.b32.xlu0 %v411, 4
        %v498 = vpop.permute.xlu0 %497
        %499 = vrot.lane.b32.xlu0 %v412, 4
        %v500 = vpop.permute.xlu0 %499
        %501 = vrot.lane.b32.xlu0 %v413, 4
        %v502 = vpop.permute.xlu0 %501
        %503 = vrot.lane.b32.xlu0 %v414, 4
        %v504 = vpop.permute.xlu0 %503
        %505 = vrot.lane.b32.xlu0 %v415, 4
        %v506 = vpop.permute.xlu0 %505
        %507 = vrot.lane.b32.xlu0 %v416, 4
        %v508 = vpop.permute.xlu0 %507
        %509 = vrot.lane.b32.xlu0 %v417, 4
        %v510 = vpop.permute.xlu0 %509
        %511 = vrot.lane.b32.xlu0 %v418, 4
        %v512 = vpop.permute.xlu0 %511
        %513 = vrot.lane.b32.xlu0 %v419, 4
        %v514 = vpop.permute.xlu0 %513
        %515 = vrot.lane.b32.xlu0 %v420, 4
        %v516 = vpop.permute.xlu0 %515
        %vm549 = vcmask 64544
        %550 = vst.msk [vmem:[#allocation3] sm:$0xff] %vm549, %v454
        %551 = vst.msk [vmem:[#allocation3 + $0x8] sm:$0xff] %vm549, %v456
        %552 = vst.msk [vmem:[#allocation3 + $0x10] sm:$0xff] %vm549, %v458
        %553 = vst.msk [vmem:[#allocation3 + $0x18] sm:$0xff] %vm549, %v460
        %554 = vst.msk [vmem:[#allocation3 + $0x20] sm:$0xff] %vm549, %v462
        %555 = vst.msk [vmem:[#allocation3 + $0x28] sm:$0xff] %vm549, %v464
        %556 = vst.msk [vmem:[#allocation3 + $0x30] sm:$0xff] %vm549, %v466
        %557 = vst.msk [vmem:[#allocation3 + $0x38] sm:$0xff] %vm549, %v468
        %558 = vst.msk [vmem:[#allocation3 + $0x40] sm:$0xff] %vm549, %v470
        %559 = vst.msk [vmem:[#allocation3 + $0x48] sm:$0xff] %vm549, %v472
        %560 = vst.msk [vmem:[#allocation3 + $0x50] sm:$0xff] %vm549, %v474
        %561 = vst.msk [vmem:[#allocation3 + $0x58] sm:$0xff] %vm549, %v476
        %562 = vst.msk [vmem:[#allocation3 + $0x60] sm:$0xff] %vm549, %v478
        %563 = vst.msk [vmem:[#allocation3 + $0x68] sm:$0xff] %vm549, %v480
        %564 = vst.msk [vmem:[#allocation3 + $0x70] sm:$0xff] %vm549, %v482
        %565 = vst.msk [vmem:[#allocation3 + $0x78] sm:$0xff] %vm549, %v484
        %566 = vst.msk [vmem:[#allocation3 + $0x80] sm:$0xff] %vm549, %v486
        %567 = vst.msk [vmem:[#allocation3 + $0x88] sm:$0xff] %vm549, %v488
        %568 = vst.msk [vmem:[#allocation3 + $0x90] sm:$0xff] %vm549, %v490
        %569 = vst.msk [vmem:[#allocation3 + $0x98] sm:$0xff] %vm549, %v492
        %570 = vst.msk [vmem:[#allocation3 + $0xa0] sm:$0xff] %vm549, %v494
        %571 = vst.msk [vmem:[#allocation3 + $0xa8] sm:$0xff] %vm549, %v496
        %572 = vst.msk [vmem:[#allocation3 + $0xb0] sm:$0xff] %vm549, %v498
        %573 = vst.msk [vmem:[#allocation3 + $0xb8] sm:$0xff] %vm549, %v500
        %574 = vst.msk [vmem:[#allocation3 + $0xc0] sm:$0xff] %vm549, %v502
        %575 = vst.msk [vmem:[#allocation3 + $0xc8] sm:$0xff] %vm549, %v504
        %576 = vst.msk [vmem:[#allocation3 + $0xd0] sm:$0xff] %vm549, %v506
        %577 = vst.msk [vmem:[#allocation3 + $0xd8] sm:$0xff] %vm549, %v508
        %578 = vst.msk [vmem:[#allocation3 + $0xe0] sm:$0xff] %vm549, %v510
        %579 = vst.msk [vmem:[#allocation3 + $0xe8] sm:$0xff] %vm549, %v512
        %580 = vst.msk [vmem:[#allocation3 + $0xf0] sm:$0xff] %vm549, %v514
        %581 = vst.msk [vmem:[#allocation3 + $0xf8] sm:$0xff] %vm549, %v516
        %v582 = vld [vmem:[#allocation2 + $0x2] sm:$0xff]
        %v583 = vld [vmem:[#allocation2 + $0xa] sm:$0xff]
        %v584 = vld [vmem:[#allocation2 + $0x1a] sm:$0xff]
        %v585 = vld [vmem:[#allocation2 + $0x22] sm:$0xff]
        %v586 = vld [vmem:[#allocation2 + $0x32] sm:$0xff]
        %v587 = vld [vmem:[#allocation2 + $0x3a] sm:$0xff]
        %v588 = vld [vmem:[#allocation2 + $0x4a] sm:$0xff]
        %v589 = vld [vmem:[#allocation2 + $0x52] sm:$0xff]
        %v590 = vld [vmem:[#allocation2 + $0x62] sm:$0xff]
        %v591 = vld [vmem:[#allocation2 + $0x6a] sm:$0xff]
        %v592 = vld [vmem:[#allocation2 + $0x7a] sm:$0xff]
        %v593 = vld [vmem:[#allocation2 + $0x82] sm:$0xff]
        %v594 = vld [vmem:[#allocation2 + $0x92] sm:$0xff]
        %v595 = vld [vmem:[#allocation2 + $0x9a] sm:$0xff]
        %v596 = vld [vmem:[#allocation2 + $0xaa] sm:$0xff]
        %v597 = vld [vmem:[#allocation2 + $0xb2] sm:$0xff]
        %v598 = vld [vmem:[#allocation2 + $0xc2] sm:$0xff]
        %v599 = vld [vmem:[#allocation2 + $0xca] sm:$0xff]
        %v600 = vld [vmem:[#allocation2 + $0xda] sm:$0xff]
        %v601 = vld [vmem:[#allocation2 + $0xe2] sm:$0xff]
        %v602 = vld [vmem:[#allocation2 + $0xf2] sm:$0xff]
        %v603 = vld [vmem:[#allocation2 + $0xfa] sm:$0xff]
        %v604 = vld [vmem:[#allocation2 + $0x10a] sm:$0xff]
        %v605 = vld [vmem:[#allocation2 + $0x112] sm:$0xff]
        %v606 = vld [vmem:[#allocation2 + $0x122] sm:$0xff]
        %v607 = vld [vmem:[#allocation2 + $0x12a] sm:$0xff]
        %v608 = vld [vmem:[#allocation2 + $0x13a] sm:$0xff]
        %v609 = vld [vmem:[#allocation2 + $0x142] sm:$0xff]
        %v610 = vld [vmem:[#allocation2 + $0x152] sm:$0xff]
        %v611 = vld [vmem:[#allocation2 + $0x15a] sm:$0xff]
        %v612 = vld [vmem:[#allocation2 + $0x16a] sm:$0xff]
        %v613 = vld [vmem:[#allocation2 + $0x172] sm:$0xff]
        %646 = vrot.lane.b32.xlu0 %v582, 8
        %v647 = vpop.permute.xlu0 %646
        %648 = vrot.lane.b32.xlu0 %v583, 8
        %v649 = vpop.permute.xlu0 %648
        %650 = vrot.lane.b32.xlu0 %v584, 8
        %v651 = vpop.permute.xlu0 %650
        %652 = vrot.lane.b32.xlu0 %v585, 8
        %v653 = vpop.permute.xlu0 %652
        %654 = vrot.lane.b32.xlu0 %v586, 8
        %v655 = vpop.permute.xlu0 %654
        %656 = vrot.lane.b32.xlu0 %v587, 8
        %v657 = vpop.permute.xlu0 %656
        %658 = vrot.lane.b32.xlu0 %v588, 8
        %v659 = vpop.permute.xlu0 %658
        %660 = vrot.lane.b32.xlu0 %v589, 8
        %v661 = vpop.permute.xlu0 %660
        %662 = vrot.lane.b32.xlu0 %v590, 8
        %v663 = vpop.permute.xlu0 %662
        %664 = vrot.lane.b32.xlu0 %v591, 8
        %v665 = vpop.permute.xlu0 %664
        %666 = vrot.lane.b32.xlu0 %v592, 8
        %v667 = vpop.permute.xlu0 %666
        %668 = vrot.lane.b32.xlu0 %v593, 8
        %v669 = vpop.permute.xlu0 %668
        %670 = vrot.lane.b32.xlu0 %v594, 8
        %v671 = vpop.permute.xlu0 %670
        %672 = vrot.lane.b32.xlu0 %v595, 8
        %v673 = vpop.permute.xlu0 %672
        %674 = vrot.lane.b32.xlu0 %v596, 8
        %v675 = vpop.permute.xlu0 %674
        %676 = vrot.lane.b32.xlu0 %v597, 8
        %v677 = vpop.permute.xlu0 %676
        %678 = vrot.lane.b32.xlu0 %v598, 8
        %v679 = vpop.permute.xlu0 %678
        %680 = vrot.lane.b32.xlu0 %v599, 8
        %v681 = vpop.permute.xlu0 %680
        %682 = vrot.lane.b32.xlu0 %v600, 8
        %v683 = vpop.permute.xlu0 %682
        %684 = vrot.lane.b32.xlu0 %v601, 8
        %v685 = vpop.permute.xlu0 %684
        %686 = vrot.lane.b32.xlu0 %v602, 8
        %v687 = vpop.permute.xlu0 %686
        %688 = vrot.lane.b32.xlu0 %v603, 8
        %v689 = vpop.permute.xlu0 %688
        %690 = vrot.lane.b32.xlu0 %v604, 8
        %v691 = vpop.permute.xlu0 %690
        %692 = vrot.lane.b32.xlu0 %v605, 8
        %v693 = vpop.permute.xlu0 %692
        %694 = vrot.lane.b32.xlu0 %v606, 8
        %v695 = vpop.permute.xlu0 %694
        %696 = vrot.lane.b32.xlu0 %v607, 8
        %v697 = vpop.permute.xlu0 %696
        %698 = vrot.lane.b32.xlu0 %v608, 8
        %v699 = vpop.permute.xlu0 %698
        %700 = vrot.lane.b32.xlu0 %v609, 8
        %v701 = vpop.permute.xlu0 %700
        %702 = vrot.lane.b32.xlu0 %v610, 8
        %v703 = vpop.permute.xlu0 %702
        %704 = vrot.lane.b32.xlu0 %v611, 8
        %v705 = vpop.permute.xlu0 %704
        %706 = vrot.lane.b32.xlu0 %v612, 8
        %v707 = vpop.permute.xlu0 %706
        %708 = vrot.lane.b32.xlu0 %v613, 8
        %v709 = vpop.permute.xlu0 %708
        %vm742 = vcmask 97344
        %743 = vst.msk [vmem:[#allocation3] sm:$0xff] %vm742, %v647
        %744 = vst.msk [vmem:[#allocation3 + $0x8] sm:$0xff] %vm742, %v649
        %745 = vst.msk [vmem:[#allocation3 + $0x10] sm:$0xff] %vm742, %v651
        %746 = vst.msk [vmem:[#allocation3 + $0x18] sm:$0xff] %vm742, %v653
        %747 = vst.msk [vmem:[#allocation3 + $0x20] sm:$0xff] %vm742, %v655
        %748 = vst.msk [vmem:[#allocation3 + $0x28] sm:$0xff] %vm742, %v657
        %749 = vst.msk [vmem:[#allocation3 + $0x30] sm:$0xff] %vm742, %v659
        %750 = vst.msk [vmem:[#allocation3 + $0x38] sm:$0xff] %vm742, %v661
        %751 = vst.msk [vmem:[#allocation3 + $0x40] sm:$0xff] %vm742, %v663
        %752 = vst.msk [vmem:[#allocation3 + $0x48] sm:$0xff] %vm742, %v665
        %753 = vst.msk [vmem:[#allocation3 + $0x50] sm:$0xff] %vm742, %v667
        %754 = vst.msk [vmem:[#allocation3 + $0x58] sm:$0xff] %vm742, %v669
        %755 = vst.msk [vmem:[#allocation3 + $0x60] sm:$0xff] %vm742, %v671
        %756 = vst.msk [vmem:[#allocation3 + $0x68] sm:$0xff] %vm742, %v673
        %757 = vst.msk [vmem:[#allocation3 + $0x70] sm:$0xff] %vm742, %v675
        %758 = vst.msk [vmem:[#allocation3 + $0x78] sm:$0xff] %vm742, %v677
        %759 = vst.msk [vmem:[#allocation3 + $0x80] sm:$0xff] %vm742, %v679
        %760 = vst.msk [vmem:[#allocation3 + $0x88] sm:$0xff] %vm742, %v681
        %761 = vst.msk [vmem:[#allocation3 + $0x90] sm:$0xff] %vm742, %v683
        %762 = vst.msk [vmem:[#allocation3 + $0x98] sm:$0xff] %vm742, %v685
        %763 = vst.msk [vmem:[#allocation3 + $0xa0] sm:$0xff] %vm742, %v687
        %764 = vst.msk [vmem:[#allocation3 + $0xa8] sm:$0xff] %vm742, %v689
        %765 = vst.msk [vmem:[#allocation3 + $0xb0] sm:$0xff] %vm742, %v691
        %766 = vst.msk [vmem:[#allocation3 + $0xb8] sm:$0xff] %vm742, %v693
        %767 = vst.msk [vmem:[#allocation3 + $0xc0] sm:$0xff] %vm742, %v695
        %768 = vst.msk [vmem:[#allocation3 + $0xc8] sm:$0xff] %vm742, %v697
        %769 = vst.msk [vmem:[#allocation3 + $0xd0] sm:$0xff] %vm742, %v699
        %770 = vst.msk [vmem:[#allocation3 + $0xd8] sm:$0xff] %vm742, %v701
        %771 = vst.msk [vmem:[#allocation3 + $0xe0] sm:$0xff] %vm742, %v703
        %772 = vst.msk [vmem:[#allocation3 + $0xe8] sm:$0xff] %vm742, %v705
        %773 = vst.msk [vmem:[#allocation3 + $0xf0] sm:$0xff] %vm742, %v707
        %774 = vst.msk [vmem:[#allocation3 + $0xf8] sm:$0xff] %vm742, %v709
        %v775 = vld [vmem:[%s213] sm:$0xff]
        %v776 = vld [vmem:[%s213 + $0x8] sm:$0xff]
        %v777 = vld [vmem:[%s213 + $0x18] sm:$0xff]
        %v778 = vld [vmem:[%s213 + $0x20] sm:$0xff]
        %v779 = vld [vmem:[%s213 + $0x30] sm:$0xff]
        %v780 = vld [vmem:[%s213 + $0x38] sm:$0xff]
        %v781 = vld [vmem:[%s213 + $0x48] sm:$0xff]
        %v782 = vld [vmem:[%s213 + $0x50] sm:$0xff]
        %v783 = vld [vmem:[%s213 + $0x60] sm:$0xff]
        %v784 = vld [vmem:[%s213 + $0x68] sm:$0xff]
        %v785 = vld [vmem:[%s213 + $0x78] sm:$0xff]
        %v786 = vld [vmem:[%s213 + $0x80] sm:$0xff]
        %v787 = vld [vmem:[%s213 + $0x90] sm:$0xff]
        %v788 = vld [vmem:[%s213 + $0x98] sm:$0xff]
        %v789 = vld [vmem:[%s213 + $0xa8] sm:$0xff]
        %v790 = vld [vmem:[%s213 + $0xb0] sm:$0xff]
        %v791 = vld [vmem:[%s213 + $0xc0] sm:$0xff]
        %v792 = vld [vmem:[%s213 + $0xc8] sm:$0xff]
        %v793 = vld [vmem:[%s213 + $0xd8] sm:$0xff]
        %v794 = vld [vmem:[%s213 + $0xe0] sm:$0xff]
        %v795 = vld [vmem:[%s213 + $0xf0] sm:$0xff]
        %v796 = vld [vmem:[%s213 + $0xf8] sm:$0xff]
        %v797 = vld [vmem:[%s213 + $0x108] sm:$0xff]
        %v798 = vld [vmem:[%s213 + $0x110] sm:$0xff]
        %v799 = vld [vmem:[%s213 + $0x120] sm:$0xff]
        %v800 = vld [vmem:[%s213 + $0x128] sm:$0xff]
        %v801 = vld [vmem:[%s213 + $0x138] sm:$0xff]
        %v802 = vld [vmem:[%s213 + $0x140] sm:$0xff]
        %v803 = vld [vmem:[%s213 + $0x150] sm:$0xff]
        %v804 = vld [vmem:[%s213 + $0x158] sm:$0xff]
        %v805 = vld [vmem:[%s213 + $0x168] sm:$0xff]
        %v806 = vld [vmem:[%s213 + $0x170] sm:$0xff]
        %839 = vrot.lane.b32.xlu0 %v775, 12
        %v840 = vpop.permute.xlu0 %839
        %841 = vrot.lane.b32.xlu0 %v776, 12
        %v842 = vpop.permute.xlu0 %841
        %843 = vrot.lane.b32.xlu0 %v777, 12
        %v844 = vpop.permute.xlu0 %843
        %845 = vrot.lane.b32.xlu0 %v778, 12
        %v846 = vpop.permute.xlu0 %845
        %847 = vrot.lane.b32.xlu0 %v779, 12
        %v848 = vpop.permute.xlu0 %847
        %849 = vrot.lane.b32.xlu0 %v780, 12
        %v850 = vpop.permute.xlu0 %849
        %851 = vrot.lane.b32.xlu0 %v781, 12
        %v852 = vpop.permute.xlu0 %851
        %853 = vrot.lane.b32.xlu0 %v782, 12
        %v854 = vpop.permute.xlu0 %853
        %855 = vrot.lane.b32.xlu0 %v783, 12
        %v856 = vpop.permute.xlu0 %855
        %857 = vrot.lane.b32.xlu0 %v784, 12
        %v858 = vpop.permute.xlu0 %857
        %859 = vrot.lane.b32.xlu0 %v785, 12
        %v860 = vpop.permute.xlu0 %859
        %861 = vrot.lane.b32.xlu0 %v786, 12
        %v862 = vpop.permute.xlu0 %861
        %863 = vrot.lane.b32.xlu0 %v787, 12
        %v864 = vpop.permute.xlu0 %863
        %865 = vrot.lane.b32.xlu0 %v788, 12
        %v866 = vpop.permute.xlu0 %865
        %867 = vrot.lane.b32.xlu0 %v789, 12
        %v868 = vpop.permute.xlu0 %867
        %869 = vrot.lane.b32.xlu0 %v790, 12
        %v870 = vpop.permute.xlu0 %869
        %871 = vrot.lane.b32.xlu0 %v791, 12
        %v872 = vpop.permute.xlu0 %871
        %873 = vrot.lane.b32.xlu0 %v792, 12
        %v874 = vpop.permute.xlu0 %873
        %875 = vrot.lane.b32.xlu0 %v793, 12
        %v876 = vpop.permute.xlu0 %875
        %877 = vrot.lane.b32.xlu0 %v794, 12
        %v878 = vpop.permute.xlu0 %877
        %879 = vrot.lane.b32.xlu0 %v795, 12
        %v880 = vpop.permute.xlu0 %879
        %881 = vrot.lane.b32.xlu0 %v796, 12
        %v882 = vpop.permute.xlu0 %881
        %883 = vrot.lane.b32.xlu0 %v797, 12
        %v884 = vpop.permute.xlu0 %883
        %885 = vrot.lane.b32.xlu0 %v798, 12
        %v886 = vpop.permute.xlu0 %885
        %887 = vrot.lane.b32.xlu0 %v799, 12
        %v888 = vpop.permute.xlu0 %887
        %889 = vrot.lane.b32.xlu0 %v800, 12
        %v890 = vpop.permute.xlu0 %889
        %891 = vrot.lane.b32.xlu0 %v801, 12
        %v892 = vpop.permute.xlu0 %891
        %893 = vrot.lane.b32.xlu0 %v802, 12
        %v894 = vpop.permute.xlu0 %893
        %895 = vrot.lane.b32.xlu0 %v803, 12
        %v896 = vpop.permute.xlu0 %895
        %897 = vrot.lane.b32.xlu0 %v804, 12
        %v898 = vpop.permute.xlu0 %897
        %899 = vrot.lane.b32.xlu0 %v805, 12
        %v900 = vpop.permute.xlu0 %899
        %901 = vrot.lane.b32.xlu0 %v806, 12
        %v902 = vpop.permute.xlu0 %901
        %vm935 = vcmask 130144
        %936 = vst.msk [vmem:[#allocation3] sm:$0xff] %vm935, %v840
        %937 = vst.msk [vmem:[#allocation3 + $0x8] sm:$0xff] %vm935, %v842
        %938 = vst.msk [vmem:[#allocation3 + $0x10] sm:$0xff] %vm935, %v844
        %939 = vst.msk [vmem:[#allocation3 + $0x18] sm:$0xff] %vm935, %v846
        %940 = vst.msk [vmem:[#allocation3 + $0x20] sm:$0xff] %vm935, %v848
        %941 = vst.msk [vmem:[#allocation3 + $0x28] sm:$0xff] %vm935, %v850
        %942 = vst.msk [vmem:[#allocation3 + $0x30] sm:$0xff] %vm935, %v852
        %943 = vst.msk [vmem:[#allocation3 + $0x38] sm:$0xff] %vm935, %v854
        %944 = vst.msk [vmem:[#allocation3 + $0x40] sm:$0xff] %vm935, %v856
        %945 = vst.msk [vmem:[#allocation3 + $0x48] sm:$0xff] %vm935, %v858
        %946 = vst.msk [vmem:[#allocation3 + $0x50] sm:$0xff] %vm935, %v860
        %947 = vst.msk [vmem:[#allocation3 + $0x58] sm:$0xff] %vm935, %v862
        %948 = vst.msk [vmem:[#allocation3 + $0x60] sm:$0xff] %vm935, %v864
        %949 = vst.msk [vmem:[#allocation3 + $0x68] sm:$0xff] %vm935, %v866
        %950 = vst.msk [vmem:[#allocation3 + $0x70] sm:$0xff] %vm935, %v868
        %951 = vst.msk [vmem:[#allocation3 + $0x78] sm:$0xff] %vm935, %v870
        %952 = vst.msk [vmem:[#allocation3 + $0x80] sm:$0xff] %vm935, %v872
        %953 = vst.msk [vmem:[#allocation3 + $0x88] sm:$0xff] %vm935, %v874
        %954 = vst.msk [vmem:[#allocation3 + $0x90] sm:$0xff] %vm935, %v876
        %955 = vst.msk [vmem:[#allocation3 + $0x98] sm:$0xff] %vm935, %v878
        %956 = vst.msk [vmem:[#allocation3 + $0xa0] sm:$0xff] %vm935, %v880
        %957 = vst.msk [vmem:[#allocation3 + $0xa8] sm:$0xff] %vm935, %v882
        %958 = vst.msk [vmem:[#allocation3 + $0xb0] sm:$0xff] %vm935, %v884
        %959 = vst.msk [vmem:[#allocation3 + $0xb8] sm:$0xff] %vm935, %v886
        %960 = vst.msk [vmem:[#allocation3 + $0xc0] sm:$0xff] %vm935, %v888
        %961 = vst.msk [vmem:[#allocation3 + $0xc8] sm:$0xff] %vm935, %v890
        %962 = vst.msk [vmem:[#allocation3 + $0xd0] sm:$0xff] %vm935, %v892
        %963 = vst.msk [vmem:[#allocation3 + $0xd8] sm:$0xff] %vm935, %v894
        %964 = vst.msk [vmem:[#allocation3 + $0xe0] sm:$0xff] %vm935, %v896
        %965 = vst.msk [vmem:[#allocation3 + $0xe8] sm:$0xff] %vm935, %v898
        %966 = vst.msk [vmem:[#allocation3 + $0xf0] sm:$0xff] %vm935, %v900
        %967 = vst.msk [vmem:[#allocation3 + $0xf8] sm:$0xff] %vm935, %v902
        %v968 = vld [vmem:[%s213 + $0x1] sm:$0xff]
        %v969 = vld [vmem:[%s213 + $0x9] sm:$0xff]
        %v970 = vld [vmem:[%s213 + $0x19] sm:$0xff]
        %v971 = vld [vmem:[%s213 + $0x21] sm:$0xff]
        %v972 = vld [vmem:[%s213 + $0x31] sm:$0xff]
        %v973 = vld [vmem:[%s213 + $0x39] sm:$0xff]
        %v974 = vld [vmem:[%s213 + $0x49] sm:$0xff]
        %v975 = vld [vmem:[%s213 + $0x51] sm:$0xff]
        %v976 = vld [vmem:[%s213 + $0x61] sm:$0xff]
        %v977 = vld [vmem:[%s213 + $0x69] sm:$0xff]
        %v978 = vld [vmem:[%s213 + $0x79] sm:$0xff]
        %v979 = vld [vmem:[%s213 + $0x81] sm:$0xff]
        %v980 = vld [vmem:[%s213 + $0x91] sm:$0xff]
        %v981 = vld [vmem:[%s213 + $0x99] sm:$0xff]
        %v982 = vld [vmem:[%s213 + $0xa9] sm:$0xff]
        %v983 = vld [vmem:[%s213 + $0xb1] sm:$0xff]
        %v984 = vld [vmem:[%s213 + $0xc1] sm:$0xff]
        %v985 = vld [vmem:[%s213 + $0xc9] sm:$0xff]
        %v986 = vld [vmem:[%s213 + $0xd9] sm:$0xff]
        %v987 = vld [vmem:[%s213 + $0xe1] sm:$0xff]
        %v988 = vld [vmem:[%s213 + $0xf1] sm:$0xff]
        %v989 = vld [vmem:[%s213 + $0xf9] sm:$0xff]
        %v990 = vld [vmem:[%s213 + $0x109] sm:$0xff]
        %v991 = vld [vmem:[%s213 + $0x111] sm:$0xff]
        %v992 = vld [vmem:[%s213 + $0x121] sm:$0xff]
        %v993 = vld [vmem:[%s213 + $0x129] sm:$0xff]
        %v994 = vld [vmem:[%s213 + $0x139] sm:$0xff]
        %v995 = vld [vmem:[%s213 + $0x141] sm:$0xff]
        %v996 = vld [vmem:[%s213 + $0x151] sm:$0xff]
        %v997 = vld [vmem:[%s213 + $0x159] sm:$0xff]
        %v998 = vld [vmem:[%s213 + $0x169] sm:$0xff]
        %v999 = vld [vmem:[%s213 + $0x171] sm:$0xff]
        %1032 = vrot.lane.b32.xlu0 %v968, 16
        %v1033 = vpop.permute.xlu0 %1032
        %1034 = vrot.lane.b32.xlu0 %v969, 16
        %v1035 = vpop.permute.xlu0 %1034
        %1036 = vrot.lane.b32.xlu0 %v970, 16
        %v1037 = vpop.permute.xlu0 %1036
        %1038 = vrot.lane.b32.xlu0 %v971, 16
        %v1039 = vpop.permute.xlu0 %1038
        %1040 = vrot.lane.b32.xlu0 %v972, 16
        %v1041 = vpop.permute.xlu0 %1040
        %1042 = vrot.lane.b32.xlu0 %v973, 16
        %v1043 = vpop.permute.xlu0 %1042
        %1044 = vrot.lane.b32.xlu0 %v974, 16
        %v1045 = vpop.permute.xlu0 %1044
        %1046 = vrot.lane.b32.xlu0 %v975, 16
        %v1047 = vpop.permute.xlu0 %1046
        %1048 = vrot.lane.b32.xlu0 %v976, 16
        %v1049 = vpop.permute.xlu0 %1048
        %1050 = vrot.lane.b32.xlu0 %v977, 16
        %v1051 = vpop.permute.xlu0 %1050
        %1052 = vrot.lane.b32.xlu0 %v978, 16
        %v1053 = vpop.permute.xlu0 %1052
        %1054 = vrot.lane.b32.xlu0 %v979, 16
        %v1055 = vpop.permute.xlu0 %1054
        %1056 = vrot.lane.b32.xlu0 %v980, 16
        %v1057 = vpop.permute.xlu0 %1056
        %1058 = vrot.lane.b32.xlu0 %v981, 16
        %v1059 = vpop.permute.xlu0 %1058
        %1060 = vrot.lane.b32.xlu0 %v982, 16
        %v1061 = vpop.permute.xlu0 %1060
        %1062 = vrot.lane.b32.xlu0 %v983, 16
        %v1063 = vpop.permute.xlu0 %1062
        %1064 = vrot.lane.b32.xlu0 %v984, 16
        %v1065 = vpop.permute.xlu0 %1064
        %1066 = vrot.lane.b32.xlu0 %v985, 16
        %v1067 = vpop.permute.xlu0 %1066
        %1068 = vrot.lane.b32.xlu0 %v986, 16
        %v1069 = vpop.permute.xlu0 %1068
        %1070 = vrot.lane.b32.xlu0 %v987, 16
        %v1071 = vpop.permute.xlu0 %1070
        %1072 = vrot.lane.b32.xlu0 %v988, 16
        %v1073 = vpop.permute.xlu0 %1072
        %1074 = vrot.lane.b32.xlu0 %v989, 16
        %v1075 = vpop.permute.xlu0 %1074
        %1076 = vrot.lane.b32.xlu0 %v990, 16
        %v1077 = vpop.permute.xlu0 %1076
        %1078 = vrot.lane.b32.xlu0 %v991, 16
        %v1079 = vpop.permute.xlu0 %1078
        %1080 = vrot.lane.b32.xlu0 %v992, 16
        %v1081 = vpop.permute.xlu0 %1080
        %1082 = vrot.lane.b32.xlu0 %v993, 16
        %v1083 = vpop.permute.xlu0 %1082
        %1084 = vrot.lane.b32.xlu0 %v994, 16
        %v1085 = vpop.permute.xlu0 %1084
        %1086 = vrot.lane.b32.xlu0 %v995, 16
        %v1087 = vpop.permute.xlu0 %1086
        %1088 = vrot.lane.b32.xlu0 %v996, 16
        %v1089 = vpop.permute.xlu0 %1088
        %1090 = vrot.lane.b32.xlu0 %v997, 16
        %v1091 = vpop.permute.xlu0 %1090
        %1092 = vrot.lane.b32.xlu0 %v998, 16
        %v1093 = vpop.permute.xlu0 %1092
        %1094 = vrot.lane.b32.xlu0 %v999, 16
        %v1095 = vpop.permute.xlu0 %1094
        %vm1128 = vcmask 162944
        %1129 = vst.msk [vmem:[#allocation3] sm:$0xff] %vm1128, %v1033
        %1130 = vst.msk [vmem:[#allocation3 + $0x8] sm:$0xff] %vm1128, %v1035
        %1131 = vst.msk [vmem:[#allocation3 + $0x10] sm:$0xff] %vm1128, %v1037
        %1132 = vst.msk [vmem:[#allocation3 + $0x18] sm:$0xff] %vm1128, %v1039
        %1133 = vst.msk [vmem:[#allocation3 + $0x20] sm:$0xff] %vm1128, %v1041
        %1134 = vst.msk [vmem:[#allocation3 + $0x28] sm:$0xff] %vm1128, %v1043
        %1135 = vst.msk [vmem:[#allocation3 + $0x30] sm:$0xff] %vm1128, %v1045
        %1136 = vst.msk [vmem:[#allocation3 + $0x38] sm:$0xff] %vm1128, %v1047
        %1137 = vst.msk [vmem:[#allocation3 + $0x40] sm:$0xff] %vm1128, %v1049
        %1138 = vst.msk [vmem:[#allocation3 + $0x48] sm:$0xff] %vm1128, %v1051
        %1139 = vst.msk [vmem:[#allocation3 + $0x50] sm:$0xff] %vm1128, %v1053
        %1140 = vst.msk [vmem:[#allocation3 + $0x58] sm:$0xff] %vm1128, %v1055
        %1141 = vst.msk [vmem:[#allocation3 + $0x60] sm:$0xff] %vm1128, %v1057
        %1142 = vst.msk [vmem:[#allocation3 + $0x68] sm:$0xff] %vm1128, %v1059
        %1143 = vst.msk [vmem:[#allocation3 + $0x70] sm:$0xff] %vm1128, %v1061
        %1144 = vst.msk [vmem:[#allocation3 + $0x78] sm:$0xff] %vm1128, %v1063
        %1145 = vst.msk [vmem:[#allocation3 + $0x80] sm:$0xff] %vm1128, %v1065
        %1146 = vst.msk [vmem:[#allocation3 + $0x88] sm:$0xff] %vm1128, %v1067
        %1147 = vst.msk [vmem:[#allocation3 + $0x90] sm:$0xff] %vm1128, %v1069
        %1148 = vst.msk [vmem:[#allocation3 + $0x98] sm:$0xff] %vm1128, %v1071
        %1149 = vst.msk [vmem:[#allocation3 + $0xa0] sm:$0xff] %vm1128, %v1073
        %1150 = vst.msk [vmem:[#allocation3 + $0xa8] sm:$0xff] %vm1128, %v1075
        %1151 = vst.msk [vmem:[#allocation3 + $0xb0] sm:$0xff] %vm1128, %v1077
        %1152 = vst.msk [vmem:[#allocation3 + $0xb8] sm:$0xff] %vm1128, %v1079
        %1153 = vst.msk [vmem:[#allocation3 + $0xc0] sm:$0xff] %vm1128, %v1081
        %1154 = vst.msk [vmem:[#allocation3 + $0xc8] sm:$0xff] %vm1128, %v1083
        %1155 = vst.msk [vmem:[#allocation3 + $0xd0] sm:$0xff] %vm1128, %v1085
        %1156 = vst.msk [vmem:[#allocation3 + $0xd8] sm:$0xff] %vm1128, %v1087
        %1157 = vst.msk [vmem:[#allocation3 + $0xe0] sm:$0xff] %vm1128, %v1089
        %1158 = vst.msk [vmem:[#allocation3 + $0xe8] sm:$0xff] %vm1128, %v1091
        %1159 = vst.msk [vmem:[#allocation3 + $0xf0] sm:$0xff] %vm1128, %v1093
        %1160 = vst.msk [vmem:[#allocation3 + $0xf8] sm:$0xff] %vm1128, %v1095
        %v1161 = vld [vmem:[%s213 + $0x2] sm:$0xff]
        %v1162 = vld [vmem:[%s213 + $0xa] sm:$0xff]
        %v1163 = vld [vmem:[%s213 + $0x1a] sm:$0xff]
        %v1164 = vld [vmem:[%s213 + $0x22] sm:$0xff]
        %v1165 = vld [vmem:[%s213 + $0x32] sm:$0xff]
        %v1166 = vld [vmem:[%s213 + $0x3a] sm:$0xff]
        %v1167 = vld [vmem:[%s213 + $0x4a] sm:$0xff]
        %v1168 = vld [vmem:[%s213 + $0x52] sm:$0xff]
        %v1169 = vld [vmem:[%s213 + $0x62] sm:$0xff]
        %v1170 = vld [vmem:[%s213 + $0x6a] sm:$0xff]
        %v1171 = vld [vmem:[%s213 + $0x7a] sm:$0xff]
        %v1172 = vld [vmem:[%s213 + $0x82] sm:$0xff]
        %v1173 = vld [vmem:[%s213 + $0x92] sm:$0xff]
        %v1174 = vld [vmem:[%s213 + $0x9a] sm:$0xff]
        %v1175 = vld [vmem:[%s213 + $0xaa] sm:$0xff]
        %v1176 = vld [vmem:[%s213 + $0xb2] sm:$0xff]
        %v1177 = vld [vmem:[%s213 + $0xc2] sm:$0xff]
        %v1178 = vld [vmem:[%s213 + $0xca] sm:$0xff]
        %v1179 = vld [vmem:[%s213 + $0xda] sm:$0xff]
        %v1180 = vld [vmem:[%s213 + $0xe2] sm:$0xff]
        %v1181 = vld [vmem:[%s213 + $0xf2] sm:$0xff]
        %v1182 = vld [vmem:[%s213 + $0xfa] sm:$0xff]
        %v1183 = vld [vmem:[%s213 + $0x10a] sm:$0xff]
        %v1184 = vld [vmem:[%s213 + $0x112] sm:$0xff]
        %v1185 = vld [vmem:[%s213 + $0x122] sm:$0xff]
        %v1186 = vld [vmem:[%s213 + $0x12a] sm:$0xff]
        %v1187 = vld [vmem:[%s213 + $0x13a] sm:$0xff]
        %v1188 = vld [vmem:[%s213 + $0x142] sm:$0xff]
        %v1189 = vld [vmem:[%s213 + $0x152] sm:$0xff]
        %v1190 = vld [vmem:[%s213 + $0x15a] sm:$0xff]
        %v1191 = vld [vmem:[%s213 + $0x16a] sm:$0xff]
        %v1192 = vld [vmem:[%s213 + $0x172] sm:$0xff]
        %1225 = vrot.lane.b32.xlu0 %v1161, 20
        %v1226 = vpop.permute.xlu0 %1225
        %1227 = vrot.lane.b32.xlu0 %v1162, 20
        %v1228 = vpop.permute.xlu0 %1227
        %1229 = vrot.lane.b32.xlu0 %v1163, 20
        %v1230 = vpop.permute.xlu0 %1229
        %1231 = vrot.lane.b32.xlu0 %v1164, 20
        %v1232 = vpop.permute.xlu0 %1231
        %1233 = vrot.lane.b32.xlu0 %v1165, 20
        %v1234 = vpop.permute.xlu0 %1233
        %1235 = vrot.lane.b32.xlu0 %v1166, 20
        %v1236 = vpop.permute.xlu0 %1235
        %1237 = vrot.lane.b32.xlu0 %v1167, 20
        %v1238 = vpop.permute.xlu0 %1237
        %1239 = vrot.lane.b32.xlu0 %v1168, 20
        %v1240 = vpop.permute.xlu0 %1239
        %1241 = vrot.lane.b32.xlu0 %v1169, 20
        %v1242 = vpop.permute.xlu0 %1241
        %1243 = vrot.lane.b32.xlu0 %v1170, 20
        %v1244 = vpop.permute.xlu0 %1243
        %1245 = vrot.lane.b32.xlu0 %v1171, 20
        %v1246 = vpop.permute.xlu0 %1245
        %1247 = vrot.lane.b32.xlu0 %v1172, 20
        %v1248 = vpop.permute.xlu0 %1247
        %1249 = vrot.lane.b32.xlu0 %v1173, 20
        %v1250 = vpop.permute.xlu0 %1249
        %1251 = vrot.lane.b32.xlu0 %v1174, 20
        %v1252 = vpop.permute.xlu0 %1251
        %1253 = vrot.lane.b32.xlu0 %v1175, 20
        %v1254 = vpop.permute.xlu0 %1253
        %1255 = vrot.lane.b32.xlu0 %v1176, 20
        %v1256 = vpop.permute.xlu0 %1255
        %1257 = vrot.lane.b32.xlu0 %v1177, 20
        %v1258 = vpop.permute.xlu0 %1257
        %1259 = vrot.lane.b32.xlu0 %v1178, 20
        %v1260 = vpop.permute.xlu0 %1259
        %1261 = vrot.lane.b32.xlu0 %v1179, 20
        %v1262 = vpop.permute.xlu0 %1261
        %1263 = vrot.lane.b32.xlu0 %v1180, 20
        %v1264 = vpop.permute.xlu0 %1263
        %1265 = vrot.lane.b32.xlu0 %v1181, 20
        %v1266 = vpop.permute.xlu0 %1265
        %1267 = vrot.lane.b32.xlu0 %v1182, 20
        %v1268 = vpop.permute.xlu0 %1267
        %1269 = vrot.lane.b32.xlu0 %v1183, 20
        %v1270 = vpop.permute.xlu0 %1269
        %1271 = vrot.lane.b32.xlu0 %v1184, 20
        %v1272 = vpop.permute.xlu0 %1271
        %1273 = vrot.lane.b32.xlu0 %v1185, 20
        %v1274 = vpop.permute.xlu0 %1273
        %1275 = vrot.lane.b32.xlu0 %v1186, 20
        %v1276 = vpop.permute.xlu0 %1275
        %1277 = vrot.lane.b32.xlu0 %v1187, 20
        %v1278 = vpop.permute.xlu0 %1277
        %1279 = vrot.lane.b32.xlu0 %v1188, 20
        %v1280 = vpop.permute.xlu0 %1279
        %1281 = vrot.lane.b32.xlu0 %v1189, 20
        %v1282 = vpop.permute.xlu0 %1281
        %1283 = vrot.lane.b32.xlu0 %v1190, 20
        %v1284 = vpop.permute.xlu0 %1283
        %1285 = vrot.lane.b32.xlu0 %v1191, 20
        %v1286 = vpop.permute.xlu0 %1285
        %1287 = vrot.lane.b32.xlu0 %v1192, 20
        %v1288 = vpop.permute.xlu0 %1287
        %vm1321 = vcmask 195744
        %1322 = vst.msk [vmem:[#allocation3] sm:$0xff] %vm1321, %v1226
        %1323 = vst.msk [vmem:[#allocation3 + $0x8] sm:$0xff] %vm1321, %v1228
        %1324 = vst.msk [vmem:[#allocation3 + $0x10] sm:$0xff] %vm1321, %v1230
        %1325 = vst.msk [vmem:[#allocation3 + $0x18] sm:$0xff] %vm1321, %v1232
        %1326 = vst.msk [vmem:[#allocation3 + $0x20] sm:$0xff] %vm1321, %v1234
        %1327 = vst.msk [vmem:[#allocation3 + $0x28] sm:$0xff] %vm1321, %v1236
        %1328 = vst.msk [vmem:[#allocation3 + $0x30] sm:$0xff] %vm1321, %v1238
        %1329 = vst.msk [vmem:[#allocation3 + $0x38] sm:$0xff] %vm1321, %v1240
        %1330 = vst.msk [vmem:[#allocation3 + $0x40] sm:$0xff] %vm1321, %v1242
        %1331 = vst.msk [vmem:[#allocation3 + $0x48] sm:$0xff] %vm1321, %v1244
        %1332 = vst.msk [vmem:[#allocation3 + $0x50] sm:$0xff] %vm1321, %v1246
        %1333 = vst.msk [vmem:[#allocation3 + $0x58] sm:$0xff] %vm1321, %v1248
        %1334 = vst.msk [vmem:[#allocation3 + $0x60] sm:$0xff] %vm1321, %v1250
        %1335 = vst.msk [vmem:[#allocation3 + $0x68] sm:$0xff] %vm1321, %v1252
        %1336 = vst.msk [vmem:[#allocation3 + $0x70] sm:$0xff] %vm1321, %v1254
        %1337 = vst.msk [vmem:[#allocation3 + $0x78] sm:$0xff] %vm1321, %v1256
        %1338 = vst.msk [vmem:[#allocation3 + $0x80] sm:$0xff] %vm1321, %v1258
        %1339 = vst.msk [vmem:[#allocation3 + $0x88] sm:$0xff] %vm1321, %v1260
        %1340 = vst.msk [vmem:[#allocation3 + $0x90] sm:$0xff] %vm1321, %v1262
        %1341 = vst.msk [vmem:[#allocation3 + $0x98] sm:$0xff] %vm1321, %v1264
        %1342 = vst.msk [vmem:[#allocation3 + $0xa0] sm:$0xff] %vm1321, %v1266
        %1343 = vst.msk [vmem:[#allocation3 + $0xa8] sm:$0xff] %vm1321, %v1268
        %1344 = vst.msk [vmem:[#allocation3 + $0xb0] sm:$0xff] %vm1321, %v1270
        %1345 = vst.msk [vmem:[#allocation3 + $0xb8] sm:$0xff] %vm1321, %v1272
        %1346 = vst.msk [vmem:[#allocation3 + $0xc0] sm:$0xff] %vm1321, %v1274
        %1347 = vst.msk [vmem:[#allocation3 + $0xc8] sm:$0xff] %vm1321, %v1276
        %1348 = vst.msk [vmem:[#allocation3 + $0xd0] sm:$0xff] %vm1321, %v1278
        %1349 = vst.msk [vmem:[#allocation3 + $0xd8] sm:$0xff] %vm1321, %v1280
        %1350 = vst.msk [vmem:[#allocation3 + $0xe0] sm:$0xff] %vm1321, %v1282
        %1351 = vst.msk [vmem:[#allocation3 + $0xe8] sm:$0xff] %vm1321, %v1284
        %1352 = vst.msk [vmem:[#allocation3 + $0xf0] sm:$0xff] %vm1321, %v1286
        %1353 = vst.msk [vmem:[#allocation3 + $0xf8] sm:$0xff] %vm1321, %v1288
        %s1354 = scalar_lea.vmem [#allocation2], 48
        %v1355 = vld [vmem:[%s1354] sm:$0xff]
        %v1356 = vld [vmem:[%s1354 + $0x8] sm:$0xff]
        %v1357 = vld [vmem:[%s1354 + $0x18] sm:$0xff]
        %v1358 = vld [vmem:[%s1354 + $0x20] sm:$0xff]
        %v1359 = vld [vmem:[%s1354 + $0x30] sm:$0xff]
        %v1360 = vld [vmem:[%s1354 + $0x38] sm:$0xff]
        %v1361 = vld [vmem:[%s1354 + $0x48] sm:$0xff]
        %v1362 = vld [vmem:[%s1354 + $0x50] sm:$0xff]
        %v1363 = vld [vmem:[%s1354 + $0x60] sm:$0xff]
        %v1364 = vld [vmem:[%s1354 + $0x68] sm:$0xff]
        %v1365 = vld [vmem:[%s1354 + $0x78] sm:$0xff]
        %v1366 = vld [vmem:[%s1354 + $0x80] sm:$0xff]
        %v1367 = vld [vmem:[%s1354 + $0x90] sm:$0xff]
        %v1368 = vld [vmem:[%s1354 + $0x98] sm:$0xff]
        %v1369 = vld [vmem:[%s1354 + $0xa8] sm:$0xff]
        %v1370 = vld [vmem:[%s1354 + $0xb0] sm:$0xff]
        %v1371 = vld [vmem:[%s1354 + $0xc0] sm:$0xff]
        %v1372 = vld [vmem:[%s1354 + $0xc8] sm:$0xff]
        %v1373 = vld [vmem:[%s1354 + $0xd8] sm:$0xff]
        %v1374 = vld [vmem:[%s1354 + $0xe0] sm:$0xff]
        %v1375 = vld [vmem:[%s1354 + $0xf0] sm:$0xff]
        %v1376 = vld [vmem:[%s1354 + $0xf8] sm:$0xff]
        %v1377 = vld [vmem:[%s1354 + $0x108] sm:$0xff]
        %v1378 = vld [vmem:[%s1354 + $0x110] sm:$0xff]
        %v1379 = vld [vmem:[%s1354 + $0x120] sm:$0xff]
        %v1380 = vld [vmem:[%s1354 + $0x128] sm:$0xff]
        %v1381 = vld [vmem:[%s1354 + $0x138] sm:$0xff]
        %v1382 = vld [vmem:[%s1354 + $0x140] sm:$0xff]
        %v1383 = vld [vmem:[%s1354 + $0x150] sm:$0xff]
        %v1384 = vld [vmem:[%s1354 + $0x158] sm:$0xff]
        %v1385 = vld [vmem:[%s1354 + $0x168] sm:$0xff]
        %v1386 = vld [vmem:[%s1354 + $0x170] sm:$0xff]
        %1419 = vrot.lane.b32.xlu0 %v1355, 24
        %v1420 = vpop.permute.xlu0 %1419
        %1421 = vrot.lane.b32.xlu0 %v1356, 24
        %v1422 = vpop.permute.xlu0 %1421
        %1423 = vrot.lane.b32.xlu0 %v1357, 24
        %v1424 = vpop.permute.xlu0 %1423
        %1425 = vrot.lane.b32.xlu0 %v1358, 24
        %v1426 = vpop.permute.xlu0 %1425
        %1427 = vrot.lane.b32.xlu0 %v1359, 24
        %v1428 = vpop.permute.xlu0 %1427
        %1429 = vrot.lane.b32.xlu0 %v1360, 24
        %v1430 = vpop.permute.xlu0 %1429
        %1431 = vrot.lane.b32.xlu0 %v1361, 24
        %v1432 = vpop.permute.xlu0 %1431
        %1433 = vrot.lane.b32.xlu0 %v1362, 24
        %v1434 = vpop.permute.xlu0 %1433
        %1435 = vrot.lane.b32.xlu0 %v1363, 24
        %v1436 = vpop.permute.xlu0 %1435
        %1437 = vrot.lane.b32.xlu0 %v1364, 24
        %v1438 = vpop.permute.xlu0 %1437
        %1439 = vrot.lane.b32.xlu0 %v1365, 24
        %v1440 = vpop.permute.xlu0 %1439
        %1441 = vrot.lane.b32.xlu0 %v1366, 24
        %v1442 = vpop.permute.xlu0 %1441
        %1443 = vrot.lane.b32.xlu0 %v1367, 24
        %v1444 = vpop.permute.xlu0 %1443
        %1445 = vrot.lane.b32.xlu0 %v1368, 24
        %v1446 = vpop.permute.xlu0 %1445
        %1447 = vrot.lane.b32.xlu0 %v1369, 24
        %v1448 = vpop.permute.xlu0 %1447
        %1449 = vrot.lane.b32.xlu0 %v1370, 24
        %v1450 = vpop.permute.xlu0 %1449
        %1451 = vrot.lane.b32.xlu0 %v1371, 24
        %v1452 = vpop.permute.xlu0 %1451
        %1453 = vrot.lane.b32.xlu0 %v1372, 24
        %v1454 = vpop.permute.xlu0 %1453
        %1455 = vrot.lane.b32.xlu0 %v1373, 24
        %v1456 = vpop.permute.xlu0 %1455
        %1457 = vrot.lane.b32.xlu0 %v1374, 24
        %v1458 = vpop.permute.xlu0 %1457
        %1459 = vrot.lane.b32.xlu0 %v1375, 24
        %v1460 = vpop.permute.xlu0 %1459
        %1461 = vrot.lane.b32.xlu0 %v1376, 24
        %v1462 = vpop.permute.xlu0 %1461
        %1463 = vrot.lane.b32.xlu0 %v1377, 24
        %v1464 = vpop.permute.xlu0 %1463
        %1465 = vrot.lane.b32.xlu0 %v1378, 24
        %v1466 = vpop.permute.xlu0 %1465
        %1467 = vrot.lane.b32.xlu0 %v1379, 24
        %v1468 = vpop.permute.xlu0 %1467
        %1469 = vrot.lane.b32.xlu0 %v1380, 24
        %v1470 = vpop.permute.xlu0 %1469
        %1471 = vrot.lane.b32.xlu0 %v1381, 24
        %v1472 = vpop.permute.xlu0 %1471
        %1473 = vrot.lane.b32.xlu0 %v1382, 24
        %v1474 = vpop.permute.xlu0 %1473
        %1475 = vrot.lane.b32.xlu0 %v1383, 24
        %v1476 = vpop.permute.xlu0 %1475
        %1477 = vrot.lane.b32.xlu0 %v1384, 24
        %v1478 = vpop.permute.xlu0 %1477
        %1479 = vrot.lane.b32.xlu0 %v1385, 24
        %v1480 = vpop.permute.xlu0 %1479
        %1481 = vrot.lane.b32.xlu0 %v1386, 24
        %v1482 = vpop.permute.xlu0 %1481
        %vm1515 = vcmask 228544
        %1516 = vst.msk [vmem:[#allocation3] sm:$0xff] %vm1515, %v1420
        %1517 = vst.msk [vmem:[#allocation3 + $0x8] sm:$0xff] %vm1515, %v1422
        %1518 = vst.msk [vmem:[#allocation3 + $0x10] sm:$0xff] %vm1515, %v1424
        %1519 = vst.msk [vmem:[#allocation3 + $0x18] sm:$0xff] %vm1515, %v1426
        %1520 = vst.msk [vmem:[#allocation3 + $0x20] sm:$0xff] %vm1515, %v1428
        %1521 = vst.msk [vmem:[#allocation3 + $0x28] sm:$0xff] %vm1515, %v1430
        %1522 = vst.msk [vmem:[#allocation3 + $0x30] sm:$0xff] %vm1515, %v1432
        %1523 = vst.msk [vmem:[#allocation3 + $0x38] sm:$0xff] %vm1515, %v1434
        %1524 = vst.msk [vmem:[#allocation3 + $0x40] sm:$0xff] %vm1515, %v1436
        %1525 = vst.msk [vmem:[#allocation3 + $0x48] sm:$0xff] %vm1515, %v1438
        %1526 = vst.msk [vmem:[#allocation3 + $0x50] sm:$0xff] %vm1515, %v1440
        %1527 = vst.msk [vmem:[#allocation3 + $0x58] sm:$0xff] %vm1515, %v1442
        %1528 = vst.msk [vmem:[#allocation3 + $0x60] sm:$0xff] %vm1515, %v1444
        %1529 = vst.msk [vmem:[#allocation3 + $0x68] sm:$0xff] %vm1515, %v1446
        %1530 = vst.msk [vmem:[#allocation3 + $0x70] sm:$0xff] %vm1515, %v1448
        %1531 = vst.msk [vmem:[#allocation3 + $0x78] sm:$0xff] %vm1515, %v1450
        %1532 = vst.msk [vmem:[#allocation3 + $0x80] sm:$0xff] %vm1515, %v1452
        %1533 = vst.msk [vmem:[#allocation3 + $0x88] sm:$0xff] %vm1515, %v1454
        %1534 = vst.msk [vmem:[#allocation3 + $0x90] sm:$0xff] %vm1515, %v1456
        %1535 = vst.msk [vmem:[#allocation3 + $0x98] sm:$0xff] %vm1515, %v1458
        %1536 = vst.msk [vmem:[#allocation3 + $0xa0] sm:$0xff] %vm1515, %v1460
        %1537 = vst.msk [vmem:[#allocation3 + $0xa8] sm:$0xff] %vm1515, %v1462
        %1538 = vst.msk [vmem:[#allocation3 + $0xb0] sm:$0xff] %vm1515, %v1464
        %1539 = vst.msk [vmem:[#allocation3 + $0xb8] sm:$0xff] %vm1515, %v1466
        %1540 = vst.msk [vmem:[#allocation3 + $0xc0] sm:$0xff] %vm1515, %v1468
        %1541 = vst.msk [vmem:[#allocation3 + $0xc8] sm:$0xff] %vm1515, %v1470
        %1542 = vst.msk [vmem:[#allocation3 + $0xd0] sm:$0xff] %vm1515, %v1472
        %1543 = vst.msk [vmem:[#allocation3 + $0xd8] sm:$0xff] %vm1515, %v1474
        %1544 = vst.msk [vmem:[#allocation3 + $0xe0] sm:$0xff] %vm1515, %v1476
        %1545 = vst.msk [vmem:[#allocation3 + $0xe8] sm:$0xff] %vm1515, %v1478
        %1546 = vst.msk [vmem:[#allocation3 + $0xf0] sm:$0xff] %vm1515, %v1480
        %1547 = vst.msk [vmem:[#allocation3 + $0xf8] sm:$0xff] %vm1515, %v1482
        %v1548 = vld [vmem:[%s1354 + $0x1] sm:$0xff]
        %v1549 = vld [vmem:[%s1354 + $0x9] sm:$0xff]
        %v1550 = vld [vmem:[%s1354 + $0x19] sm:$0xff]
        %v1551 = vld [vmem:[%s1354 + $0x21] sm:$0xff]
        %v1552 = vld [vmem:[%s1354 + $0x31] sm:$0xff]
        %v1553 = vld [vmem:[%s1354 + $0x39] sm:$0xff]
        %v1554 = vld [vmem:[%s1354 + $0x49] sm:$0xff]
        %v1555 = vld [vmem:[%s1354 + $0x51] sm:$0xff]
        %v1556 = vld [vmem:[%s1354 + $0x61] sm:$0xff]
        %v1557 = vld [vmem:[%s1354 + $0x69] sm:$0xff]
        %v1558 = vld [vmem:[%s1354 + $0x79] sm:$0xff]
        %v1559 = vld [vmem:[%s1354 + $0x81] sm:$0xff]
        %v1560 = vld [vmem:[%s1354 + $0x91] sm:$0xff]
        %v1561 = vld [vmem:[%s1354 + $0x99] sm:$0xff]
        %v1562 = vld [vmem:[%s1354 + $0xa9] sm:$0xff]
        %v1563 = vld [vmem:[%s1354 + $0xb1] sm:$0xff]
        %v1564 = vld [vmem:[%s1354 + $0xc1] sm:$0xff]
        %v1565 = vld [vmem:[%s1354 + $0xc9] sm:$0xff]
        %v1566 = vld [vmem:[%s1354 + $0xd9] sm:$0xff]
        %v1567 = vld [vmem:[%s1354 + $0xe1] sm:$0xff]
        %v1568 = vld [vmem:[%s1354 + $0xf1] sm:$0xff]
        %v1569 = vld [vmem:[%s1354 + $0xf9] sm:$0xff]
        %v1570 = vld [vmem:[%s1354 + $0x109] sm:$0xff]
        %v1571 = vld [vmem:[%s1354 + $0x111] sm:$0xff]
        %v1572 = vld [vmem:[%s1354 + $0x121] sm:$0xff]
        %v1573 = vld [vmem:[%s1354 + $0x129] sm:$0xff]
        %v1574 = vld [vmem:[%s1354 + $0x139] sm:$0xff]
        %v1575 = vld [vmem:[%s1354 + $0x141] sm:$0xff]
        %v1576 = vld [vmem:[%s1354 + $0x151] sm:$0xff]
        %v1577 = vld [vmem:[%s1354 + $0x159] sm:$0xff]
        %v1578 = vld [vmem:[%s1354 + $0x169] sm:$0xff]
        %v1579 = vld [vmem:[%s1354 + $0x171] sm:$0xff]
        %1612 = vrot.lane.b32.xlu0 %v1548, 28
        %v1613 = vpop.permute.xlu0 %1612
        %1614 = vrot.lane.b32.xlu0 %v1549, 28
        %v1615 = vpop.permute.xlu0 %1614
        %1616 = vrot.lane.b32.xlu0 %v1550, 28
        %v1617 = vpop.permute.xlu0 %1616
        %1618 = vrot.lane.b32.xlu0 %v1551, 28
        %v1619 = vpop.permute.xlu0 %1618
        %1620 = vrot.lane.b32.xlu0 %v1552, 28
        %v1621 = vpop.permute.xlu0 %1620
        %1622 = vrot.lane.b32.xlu0 %v1553, 28
        %v1623 = vpop.permute.xlu0 %1622
        %1624 = vrot.lane.b32.xlu0 %v1554, 28
        %v1625 = vpop.permute.xlu0 %1624
        %1626 = vrot.lane.b32.xlu0 %v1555, 28
        %v1627 = vpop.permute.xlu0 %1626
        %1628 = vrot.lane.b32.xlu0 %v1556, 28
        %v1629 = vpop.permute.xlu0 %1628
        %1630 = vrot.lane.b32.xlu0 %v1557, 28
        %v1631 = vpop.permute.xlu0 %1630
        %1632 = vrot.lane.b32.xlu0 %v1558, 28
        %v1633 = vpop.permute.xlu0 %1632
        %1634 = vrot.lane.b32.xlu0 %v1559, 28
        %v1635 = vpop.permute.xlu0 %1634
        %1636 = vrot.lane.b32.xlu0 %v1560, 28
        %v1637 = vpop.permute.xlu0 %1636
        %1638 = vrot.lane.b32.xlu0 %v1561, 28
        %v1639 = vpop.permute.xlu0 %1638
        %1640 = vrot.lane.b32.xlu0 %v1562, 28
        %v1641 = vpop.permute.xlu0 %1640
        %1642 = vrot.lane.b32.xlu0 %v1563, 28
        %v1643 = vpop.permute.xlu0 %1642
        %1644 = vrot.lane.b32.xlu0 %v1564, 28
        %v1645 = vpop.permute.xlu0 %1644
        %1646 = vrot.lane.b32.xlu0 %v1565, 28
        %v1647 = vpop.permute.xlu0 %1646
        %1648 = vrot.lane.b32.xlu0 %v1566, 28
        %v1649 = vpop.permute.xlu0 %1648
        %1650 = vrot.lane.b32.xlu0 %v1567, 28
        %v1651 = vpop.permute.xlu0 %1650
        %1652 = vrot.lane.b32.xlu0 %v1568, 28
        %v1653 = vpop.permute.xlu0 %1652
        %1654 = vrot.lane.b32.xlu0 %v1569, 28
        %v1655 = vpop.permute.xlu0 %1654
        %1656 = vrot.lane.b32.xlu0 %v1570, 28
        %v1657 = vpop.permute.xlu0 %1656
        %1658 = vrot.lane.b32.xlu0 %v1571, 28
        %v1659 = vpop.permute.xlu0 %1658
        %1660 = vrot.lane.b32.xlu0 %v1572, 28
        %v1661 = vpop.permute.xlu0 %1660
        %1662 = vrot.lane.b32.xlu0 %v1573, 28
        %v1663 = vpop.permute.xlu0 %1662
        %1664 = vrot.lane.b32.xlu0 %v1574, 28
        %v1665 = vpop.permute.xlu0 %1664
        %1666 = vrot.lane.b32.xlu0 %v1575, 28
        %v1667 = vpop.permute.xlu0 %1666
        %1668 = vrot.lane.b32.xlu0 %v1576, 28
        %v1669 = vpop.permute.xlu0 %1668
        %1670 = vrot.lane.b32.xlu0 %v1577, 28
        %v1671 = vpop.permute.xlu0 %1670
        %1672 = vrot.lane.b32.xlu0 %v1578, 28
        %v1673 = vpop.permute.xlu0 %1672
        %1674 = vrot.lane.b32.xlu0 %v1579, 28
        %v1675 = vpop.permute.xlu0 %1674
        %vm1708 = vcmask 261344
        %1709 = vst.msk [vmem:[#allocation3] sm:$0xff] %vm1708, %v1613
        %1710 = vst.msk [vmem:[#allocation3 + $0x8] sm:$0xff] %vm1708, %v1615
        %1711 = vst.msk [vmem:[#allocation3 + $0x10] sm:$0xff] %vm1708, %v1617
        %1712 = vst.msk [vmem:[#allocation3 + $0x18] sm:$0xff] %vm1708, %v1619
        %1713 = vst.msk [vmem:[#allocation3 + $0x20] sm:$0xff] %vm1708, %v1621
        %1714 = vst.msk [vmem:[#allocation3 + $0x28] sm:$0xff] %vm1708, %v1623
        %1715 = vst.msk [vmem:[#allocation3 + $0x30] sm:$0xff] %vm1708, %v1625
        %1716 = vst.msk [vmem:[#allocation3 + $0x38] sm:$0xff] %vm1708, %v1627
        %1717 = vst.msk [vmem:[#allocation3 + $0x40] sm:$0xff] %vm1708, %v1629
        %1718 = vst.msk [vmem:[#allocation3 + $0x48] sm:$0xff] %vm1708, %v1631
        %1719 = vst.msk [vmem:[#allocation3 + $0x50] sm:$0xff] %vm1708, %v1633
        %1720 = vst.msk [vmem:[#allocation3 + $0x58] sm:$0xff] %vm1708, %v1635
        %1721 = vst.msk [vmem:[#allocation3 + $0x60] sm:$0xff] %vm1708, %v1637
        %1722 = vst.msk [vmem:[#allocation3 + $0x68] sm:$0xff] %vm1708, %v1639
        %1723 = vst.msk [vmem:[#allocation3 + $0x70] sm:$0xff] %vm1708, %v1641
        %1724 = vst.msk [vmem:[#allocation3 + $0x78] sm:$0xff] %vm1708, %v1643
        %1725 = vst.msk [vmem:[#allocation3 + $0x80] sm:$0xff] %vm1708, %v1645
        %1726 = vst.msk [vmem:[#allocation3 + $0x88] sm:$0xff] %vm1708, %v1647
        %1727 = vst.msk [vmem:[#allocation3 + $0x90] sm:$0xff] %vm1708, %v1649
        %1728 = vst.msk [vmem:[#allocation3 + $0x98] sm:$0xff] %vm1708, %v1651
        %1729 = vst.msk [vmem:[#allocation3 + $0xa0] sm:$0xff] %vm1708, %v1653
        %1730 = vst.msk [vmem:[#allocation3 + $0xa8] sm:$0xff] %vm1708, %v1655
        %1731 = vst.msk [vmem:[#allocation3 + $0xb0] sm:$0xff] %vm1708, %v1657
        %1732 = vst.msk [vmem:[#allocation3 + $0xb8] sm:$0xff] %vm1708, %v1659
        %1733 = vst.msk [vmem:[#allocation3 + $0xc0] sm:$0xff] %vm1708, %v1661
        %1734 = vst.msk [vmem:[#allocation3 + $0xc8] sm:$0xff] %vm1708, %v1663
        %1735 = vst.msk [vmem:[#allocation3 + $0xd0] sm:$0xff] %vm1708, %v1665
        %1736 = vst.msk [vmem:[#allocation3 + $0xd8] sm:$0xff] %vm1708, %v1667
        %1737 = vst.msk [vmem:[#allocation3 + $0xe0] sm:$0xff] %vm1708, %v1669
        %1738 = vst.msk [vmem:[#allocation3 + $0xe8] sm:$0xff] %vm1708, %v1671
        %1739 = vst.msk [vmem:[#allocation3 + $0xf0] sm:$0xff] %vm1708, %v1673
        %1740 = vst.msk [vmem:[#allocation3 + $0xf8] sm:$0xff] %vm1708, %v1675
        %v1741 = vld [vmem:[%s1354 + $0x2] sm:$0xff]
        %v1742 = vld [vmem:[%s1354 + $0xa] sm:$0xff]
        %v1743 = vld [vmem:[%s1354 + $0x1a] sm:$0xff]
        %v1744 = vld [vmem:[%s1354 + $0x22] sm:$0xff]
        %v1745 = vld [vmem:[%s1354 + $0x32] sm:$0xff]
        %v1746 = vld [vmem:[%s1354 + $0x3a] sm:$0xff]
        %v1747 = vld [vmem:[%s1354 + $0x4a] sm:$0xff]
        %v1748 = vld [vmem:[%s1354 + $0x52] sm:$0xff]
        %v1749 = vld [vmem:[%s1354 + $0x62] sm:$0xff]
        %v1750 = vld [vmem:[%s1354 + $0x6a] sm:$0xff]
        %v1751 = vld [vmem:[%s1354 + $0x7a] sm:$0xff]
        %v1752 = vld [vmem:[%s1354 + $0x82] sm:$0xff]
        %v1753 = vld [vmem:[%s1354 + $0x92] sm:$0xff]
        %v1754 = vld [vmem:[%s1354 + $0x9a] sm:$0xff]
        %v1755 = vld [vmem:[%s1354 + $0xaa] sm:$0xff]
        %v1756 = vld [vmem:[%s1354 + $0xb2] sm:$0xff]
        %v1757 = vld [vmem:[%s1354 + $0xc2] sm:$0xff]
        %v1758 = vld [vmem:[%s1354 + $0xca] sm:$0xff]
        %v1759 = vld [vmem:[%s1354 + $0xda] sm:$0xff]
        %v1760 = vld [vmem:[%s1354 + $0xe2] sm:$0xff]
        %v1761 = vld [vmem:[%s1354 + $0xf2] sm:$0xff]
        %v1762 = vld [vmem:[%s1354 + $0xfa] sm:$0xff]
        %v1763 = vld [vmem:[%s1354 + $0x10a] sm:$0xff]
        %v1764 = vld [vmem:[%s1354 + $0x112] sm:$0xff]
        %v1765 = vld [vmem:[%s1354 + $0x122] sm:$0xff]
        %v1766 = vld [vmem:[%s1354 + $0x12a] sm:$0xff]
        %v1767 = vld [vmem:[%s1354 + $0x13a] sm:$0xff]
        %v1768 = vld [vmem:[%s1354 + $0x142] sm:$0xff]
        %v1769 = vld [vmem:[%s1354 + $0x152] sm:$0xff]
        %v1770 = vld [vmem:[%s1354 + $0x15a] sm:$0xff]
        %v1771 = vld [vmem:[%s1354 + $0x16a] sm:$0xff]
        %v1772 = vld [vmem:[%s1354 + $0x172] sm:$0xff]
        %1805 = vrot.lane.b32.xlu0 %v1741, 32
        %v1806 = vpop.permute.xlu0 %1805
        %1807 = vrot.lane.b32.xlu0 %v1742, 32
        %v1808 = vpop.permute.xlu0 %1807
        %1809 = vrot.lane.b32.xlu0 %v1743, 32
        %v1810 = vpop.permute.xlu0 %1809
        %1811 = vrot.lane.b32.xlu0 %v1744, 32
        %v1812 = vpop.permute.xlu0 %1811
        %1813 = vrot.lane.b32.xlu0 %v1745, 32
        %v1814 = vpop.permute.xlu0 %1813
        %1815 = vrot.lane.b32.xlu0 %v1746, 32
        %v1816 = vpop.permute.xlu0 %1815
        %1817 = vrot.lane.b32.xlu0 %v1747, 32
        %v1818 = vpop.permute.xlu0 %1817
        %1819 = vrot.lane.b32.xlu0 %v1748, 32
        %v1820 = vpop.permute.xlu0 %1819
        %1821 = vrot.lane.b32.xlu0 %v1749, 32
        %v1822 = vpop.permute.xlu0 %1821
        %1823 = vrot.lane.b32.xlu0 %v1750, 32
        %v1824 = vpop.permute.xlu0 %1823
        %1825 = vrot.lane.b32.xlu0 %v1751, 32
        %v1826 = vpop.permute.xlu0 %1825
        %1827 = vrot.lane.b32.xlu0 %v1752, 32
        %v1828 = vpop.permute.xlu0 %1827
        %1829 = vrot.lane.b32.xlu0 %v1753, 32
        %v1830 = vpop.permute.xlu0 %1829
        %1831 = vrot.lane.b32.xlu0 %v1754, 32
        %v1832 = vpop.permute.xlu0 %1831
        %1833 = vrot.lane.b32.xlu0 %v1755, 32
        %v1834 = vpop.permute.xlu0 %1833
        %1835 = vrot.lane.b32.xlu0 %v1756, 32
        %v1836 = vpop.permute.xlu0 %1835
        %1837 = vrot.lane.b32.xlu0 %v1757, 32
        %v1838 = vpop.permute.xlu0 %1837
        %1839 = vrot.lane.b32.xlu0 %v1758, 32
        %v1840 = vpop.permute.xlu0 %1839
        %1841 = vrot.lane.b32.xlu0 %v1759, 32
        %v1842 = vpop.permute.xlu0 %1841
        %1843 = vrot.lane.b32.xlu0 %v1760, 32
        %v1844 = vpop.permute.xlu0 %1843
        %1845 = vrot.lane.b32.xlu0 %v1761, 32
        %v1846 = vpop.permute.xlu0 %1845
        %1847 = vrot.lane.b32.xlu0 %v1762, 32
        %v1848 = vpop.permute.xlu0 %1847
        %1849 = vrot.lane.b32.xlu0 %v1763, 32
        %v1850 = vpop.permute.xlu0 %1849
        %1851 = vrot.lane.b32.xlu0 %v1764, 32
        %v1852 = vpop.permute.xlu0 %1851
        %1853 = vrot.lane.b32.xlu0 %v1765, 32
        %v1854 = vpop.permute.xlu0 %1853
        %1855 = vrot.lane.b32.xlu0 %v1766, 32
        %v1856 = vpop.permute.xlu0 %1855
        %1857 = vrot.lane.b32.xlu0 %v1767, 32
        %v1858 = vpop.permute.xlu0 %1857
        %1859 = vrot.lane.b32.xlu0 %v1768, 32
        %v1860 = vpop.permute.xlu0 %1859
        %1861 = vrot.lane.b32.xlu0 %v1769, 32
        %v1862 = vpop.permute.xlu0 %1861
        %1863 = vrot.lane.b32.xlu0 %v1770, 32
        %v1864 = vpop.permute.xlu0 %1863
        %1865 = vrot.lane.b32.xlu0 %v1771, 32
        %v1866 = vpop.permute.xlu0 %1865
        %1867 = vrot.lane.b32.xlu0 %v1772, 32
        %v1868 = vpop.permute.xlu0 %1867
        %vm1901 = vcmask 294144
        %1902 = vst.msk [vmem:[#allocation3] sm:$0xff] %vm1901, %v1806
        %1903 = vst.msk [vmem:[#allocation3 + $0x8] sm:$0xff] %vm1901, %v1808
        %1904 = vst.msk [vmem:[#allocation3 + $0x10] sm:$0xff] %vm1901, %v1810
        %1905 = vst.msk [vmem:[#allocation3 + $0x18] sm:$0xff] %vm1901, %v1812
        %1906 = vst.msk [vmem:[#allocation3 + $0x20] sm:$0xff] %vm1901, %v1814
        %1907 = vst.msk [vmem:[#allocation3 + $0x28] sm:$0xff] %vm1901, %v1816
        %1908 = vst.msk [vmem:[#allocation3 + $0x30] sm:$0xff] %vm1901, %v1818
        %1909 = vst.msk [vmem:[#allocation3 + $0x38] sm:$0xff] %vm1901, %v1820
        %1910 = vst.msk [vmem:[#allocation3 + $0x40] sm:$0xff] %vm1901, %v1822
        %1911 = vst.msk [vmem:[#allocation3 + $0x48] sm:$0xff] %vm1901, %v1824
        %1912 = vst.msk [vmem:[#allocation3 + $0x50] sm:$0xff] %vm1901, %v1826
        %1913 = vst.msk [vmem:[#allocation3 + $0x58] sm:$0xff] %vm1901, %v1828
        %1914 = vst.msk [vmem:[#allocation3 + $0x60] sm:$0xff] %vm1901, %v1830
        %1915 = vst.msk [vmem:[#allocation3 + $0x68] sm:$0xff] %vm1901, %v1832
        %1916 = vst.msk [vmem:[#allocation3 + $0x70] sm:$0xff] %vm1901, %v1834
        %1917 = vst.msk [vmem:[#allocation3 + $0x78] sm:$0xff] %vm1901, %v1836
        %1918 = vst.msk [vmem:[#allocation3 + $0x80] sm:$0xff] %vm1901, %v1838
        %1919 = vst.msk [vmem:[#allocation3 + $0x88] sm:$0xff] %vm1901, %v1840
        %1920 = vst.msk [vmem:[#allocation3 + $0x90] sm:$0xff] %vm1901, %v1842
        %1921 = vst.msk [vmem:[#allocation3 + $0x98] sm:$0xff] %vm1901, %v1844
        %1922 = vst.msk [vmem:[#allocation3 + $0xa0] sm:$0xff] %vm1901, %v1846
        %1923 = vst.msk [vmem:[#allocation3 + $0xa8] sm:$0xff] %vm1901, %v1848
        %1924 = vst.msk [vmem:[#allocation3 + $0xb0] sm:$0xff] %vm1901, %v1850
        %1925 = vst.msk [vmem:[#allocation3 + $0xb8] sm:$0xff] %vm1901, %v1852
        %1926 = vst.msk [vmem:[#allocation3 + $0xc0] sm:$0xff] %vm1901, %v1854
        %1927 = vst.msk [vmem:[#allocation3 + $0xc8] sm:$0xff] %vm1901, %v1856
        %1928 = vst.msk [vmem:[#allocation3 + $0xd0] sm:$0xff] %vm1901, %v1858
        %1929 = vst.msk [vmem:[#allocation3 + $0xd8] sm:$0xff] %vm1901, %v1860
        %1930 = vst.msk [vmem:[#allocation3 + $0xe0] sm:$0xff] %vm1901, %v1862
        %1931 = vst.msk [vmem:[#allocation3 + $0xe8] sm:$0xff] %vm1901, %v1864
        %1932 = vst.msk [vmem:[#allocation3 + $0xf0] sm:$0xff] %vm1901, %v1866
        %1933 = vst.msk [vmem:[#allocation3 + $0xf8] sm:$0xff] %vm1901, %v1868
        %v1934 = vld [vmem:[#allocation3] sm:$0xff]
        %v1935 = vld [vmem:[#allocation3 + $0x8] sm:$0xff]
        %v1936 = vld [vmem:[#allocation3 + $0x10] sm:$0xff]
        %v1937 = vld [vmem:[#allocation3 + $0x18] sm:$0xff]
        %v1938 = vld [vmem:[#allocation3 + $0x20] sm:$0xff]
        %v1939 = vld [vmem:[#allocation3 + $0x28] sm:$0xff]
        %v1940 = vld [vmem:[#allocation3 + $0x30] sm:$0xff]
        %v1941 = vld [vmem:[#allocation3 + $0x38] sm:$0xff]
        %v1942 = vld [vmem:[#allocation3 + $0x40] sm:$0xff]
        %v1943 = vld [vmem:[#allocation3 + $0x48] sm:$0xff]
        %v1944 = vld [vmem:[#allocation3 + $0x50] sm:$0xff]
        %v1945 = vld [vmem:[#allocation3 + $0x58] sm:$0xff]
        %v1946 = vld [vmem:[#allocation3 + $0x60] sm:$0xff]
        %v1947 = vld [vmem:[#allocation3 + $0x68] sm:$0xff]
        %v1948 = vld [vmem:[#allocation3 + $0x70] sm:$0xff]
        %v1949 = vld [vmem:[#allocation3 + $0x78] sm:$0xff]
        %v1950 = vld [vmem:[#allocation3 + $0x80] sm:$0xff]
        %v1951 = vld [vmem:[#allocation3 + $0x88] sm:$0xff]
        %v1952 = vld [vmem:[#allocation3 + $0x90] sm:$0xff]
        %v1953 = vld [vmem:[#allocation3 + $0x98] sm:$0xff]
        %v1954 = vld [vmem:[#allocation3 + $0xa0] sm:$0xff]
        %v1955 = vld [vmem:[#allocation3 + $0xa8] sm:$0xff]
        %v1956 = vld [vmem:[#allocation3 + $0xb0] sm:$0xff]
        %v1957 = vld [vmem:[#allocation3 + $0xb8] sm:$0xff]
        %v1958 = vld [vmem:[#allocation3 + $0xc0] sm:$0xff]
        %v1959 = vld [vmem:[#allocation3 + $0xc8] sm:$0xff]
        %v1960 = vld [vmem:[#allocation3 + $0xd0] sm:$0xff]
        %v1961 = vld [vmem:[#allocation3 + $0xd8] sm:$0xff]
        %v1962 = vld [vmem:[#allocation3 + $0xe0] sm:$0xff]
        %v1963 = vld [vmem:[#allocation3 + $0xe8] sm:$0xff]
        %v1964 = vld [vmem:[#allocation3 + $0xf0] sm:$0xff]
        %v1965 = vld [vmem:[#allocation3 + $0xf8] sm:$0xff]
        %v1966 = vld [vmem:[%s1] sm:$0xff]
        %v1967 = vld [vmem:[%s1 + $0x8] sm:$0xff]
        %v1968 = vld [vmem:[%s1 + $0x10] sm:$0xff]
        %v1969 = vld [vmem:[%s1 + $0x18] sm:$0xff]
        %v1970 = vld [vmem:[%s1 + $0x20] sm:$0xf]
        %vm1971 = vcmask 293888
        %v1973 = vsel %vm1971, %v1934, 0
        %v1976 = vsel %vm1971, %v1935, 0
        %v1979 = vsel %vm1971, %v1936, 0
        %v1982 = vsel %vm1971, %v1937, 0
        %v1985 = vsel %vm1971, %v1938, 0
        %v1988 = vsel %vm1971, %v1939, 0
        %v1991 = vsel %vm1971, %v1940, 0
        %v1994 = vsel %vm1971, %v1941, 0
        %v1997 = vsel %vm1971, %v1942, 0
        %v2000 = vsel %vm1971, %v1943, 0
        %v2003 = vsel %vm1971, %v1944, 0
        %v2006 = vsel %vm1971, %v1945, 0
        %v2009 = vsel %vm1971, %v1946, 0
        %v2012 = vsel %vm1971, %v1947, 0
        %v2015 = vsel %vm1971, %v1948, 0
        %v2018 = vsel %vm1971, %v1949, 0
        %v2021 = vsel %vm1971, %v1950, 0
        %v2024 = vsel %vm1971, %v1951, 0
        %v2027 = vsel %vm1971, %v1952, 0
        %v2030 = vsel %vm1971, %v1953, 0
        %v2033 = vsel %vm1971, %v1954, 0
        %v2036 = vsel %vm1971, %v1955, 0
        %v2039 = vsel %vm1971, %v1956, 0
        %v2042 = vsel %vm1971, %v1957, 0
        %v2045 = vsel %vm1971, %v1958, 0
        %v2048 = vsel %vm1971, %v1959, 0
        %v2051 = vsel %vm1971, %v1960, 0
        %v2054 = vsel %vm1971, %v1961, 0
        %v2057 = vsel %vm1971, %v1962, 0
        %v2060 = vsel %vm1971, %v1963, 0
        %v2063 = vsel %vm1971, %v1964, 0
        %v2066 = vsel %vm1971, %v1965, 0
        %vm2068 = vcmask 1043456
        %v2070 = vsel %vm2068, %v1970, 0
        %2072 = vmatpush.msra.mxu0 0.0
        %2073 = vmatpush.msra.mxu0 0.0
        %2074 = vmatpush.msra.mxu0 0.0
        %2075 = vmatpush.msra.mxu0 0.0
        %2076 = vmatpush.msra.mxu0 0.0
        %2077 = vmatpush.msra.mxu0 0.0
        %2078 = vmatpush.msra.mxu0 0.0
        %2079 = vmatpush.msra.mxu0 0.0
        %2080 = vmatpush.msra.mxu0 0.0
        %2081 = vmatpush.msra.mxu0 0.0
        %2082 = vmatpush.msra.mxu0 0.0
        %2083 = vmatpush.msra.mxu0 %v2070
        %2084 = vmatpush.msra.mxu0 %v1969
        %2085 = vmatpush.msra.mxu0 %v1968
        %2086 = vmatpush.msra.mxu0 %v1967
        %2087 = vmatpush.msra.mxu0 %v1966
        %2088 = vmatmul.f32.gmra.mxu0 %v1973
        %v2089 = vpop.f32.mrf.mxu0
        %v2090 = vadd.f32 0.0, %v2089
        %2091 = vmatmul.f32.gmra.mxu0 %v1976
        %v2092 = vpop.f32.mrf.mxu0
        %v2093 = vadd.f32 0.0, %v2092
        %2094 = vmatmul.f32.gmra.mxu0 %v1979
        %v2095 = vpop.f32.mrf.mxu0
        %v2096 = vadd.f32 0.0, %v2095
        %2097 = vmatmul.f32.gmra.mxu0 %v1982
        %v2098 = vpop.f32.mrf.mxu0
        %v2099 = vadd.f32 0.0, %v2098
        %2100 = vmatmul.f32.gmra.mxu0 %v1985
        %v2101 = vpop.f32.mrf.mxu0
        %v2102 = vadd.f32 0.0, %v2101
        %2103 = vmatmul.f32.gmra.mxu0 %v1988
        %v2104 = vpop.f32.mrf.mxu0
        %v2105 = vadd.f32 0.0, %v2104
        %2106 = vmatmul.f32.gmra.mxu0 %v1991
        %v2107 = vpop.f32.mrf.mxu0
        %v2108 = vadd.f32 0.0, %v2107
        %2109 = vmatmul.f32.gmra.mxu0 %v1994
        %v2110 = vpop.f32.mrf.mxu0
        %v2111 = vadd.f32 0.0, %v2110
        %2112 = vmatmul.f32.gmra.mxu0 %v1997
        %v2113 = vpop.f32.mrf.mxu0
        %v2114 = vadd.f32 0.0, %v2113
        %2115 = vmatmul.f32.gmra.mxu0 %v2000
        %v2116 = vpop.f32.mrf.mxu0
        %v2117 = vadd.f32 0.0, %v2116
        %2118 = vmatmul.f32.gmra.mxu0 %v2003
        %v2119 = vpop.f32.mrf.mxu0
        %v2120 = vadd.f32 0.0, %v2119
        %2121 = vmatmul.f32.gmra.mxu0 %v2006
        %v2122 = vpop.f32.mrf.mxu0
        %v2123 = vadd.f32 0.0, %v2122
        %2124 = vmatmul.f32.gmra.mxu0 %v2009
        %v2125 = vpop.f32.mrf.mxu0
        %v2126 = vadd.f32 0.0, %v2125
        %2127 = vmatmul.f32.gmra.mxu0 %v2012
        %v2128 = vpop.f32.mrf.mxu0
        %v2129 = vadd.f32 0.0, %v2128
        %2130 = vmatmul.f32.gmra.mxu0 %v2015
        %v2131 = vpop.f32.mrf.mxu0
        %v2132 = vadd.f32 0.0, %v2131
        %2133 = vmatmul.f32.gmra.mxu0 %v2018
        %v2134 = vpop.f32.mrf.mxu0
        %v2135 = vadd.f32 0.0, %v2134
        %2136 = vmatmul.f32.gmra.mxu0 %v2021
        %v2137 = vpop.f32.mrf.mxu0
        %v2138 = vadd.f32 0.0, %v2137
        %2139 = vmatmul.f32.gmra.mxu0 %v2024
        %v2140 = vpop.f32.mrf.mxu0
        %v2141 = vadd.f32 0.0, %v2140
        %2142 = vmatmul.f32.gmra.mxu0 %v2027
        %v2143 = vpop.f32.mrf.mxu0
        %v2144 = vadd.f32 0.0, %v2143
        %2145 = vmatmul.f32.gmra.mxu0 %v2030
        %v2146 = vpop.f32.mrf.mxu0
        %v2147 = vadd.f32 0.0, %v2146
        %2148 = vmatmul.f32.gmra.mxu0 %v2033
        %v2149 = vpop.f32.mrf.mxu0
        %v2150 = vadd.f32 0.0, %v2149
        %2151 = vmatmul.f32.gmra.mxu0 %v2036
        %v2152 = vpop.f32.mrf.mxu0
        %v2153 = vadd.f32 0.0, %v2152
        %2154 = vmatmul.f32.gmra.mxu0 %v2039
        %v2155 = vpop.f32.mrf.mxu0
        %v2156 = vadd.f32 0.0, %v2155
        %2157 = vmatmul.f32.gmra.mxu0 %v2042
        %v2158 = vpop.f32.mrf.mxu0
        %v2159 = vadd.f32 0.0, %v2158
        %2160 = vmatmul.f32.gmra.mxu0 %v2045
        %v2161 = vpop.f32.mrf.mxu0
        %v2162 = vadd.f32 0.0, %v2161
        %2163 = vmatmul.f32.gmra.mxu0 %v2048
        %v2164 = vpop.f32.mrf.mxu0
        %v2165 = vadd.f32 0.0, %v2164
        %2166 = vmatmul.f32.gmra.mxu0 %v2051
        %v2167 = vpop.f32.mrf.mxu0
        %v2168 = vadd.f32 0.0, %v2167
        %2169 = vmatmul.f32.gmra.mxu0 %v2054
        %v2170 = vpop.f32.mrf.mxu0
        %v2171 = vadd.f32 0.0, %v2170
        %2172 = vmatmul.f32.gmra.mxu0 %v2057
        %v2173 = vpop.f32.mrf.mxu0
        %v2174 = vadd.f32 0.0, %v2173
        %2175 = vmatmul.f32.gmra.mxu0 %v2060
        %v2176 = vpop.f32.mrf.mxu0
        %v2177 = vadd.f32 0.0, %v2176
        %2178 = vmatmul.f32.gmra.mxu0 %v2063
        %v2179 = vpop.f32.mrf.mxu0
        %v2180 = vadd.f32 0.0, %v2179
        %2181 = vmatmul.f32.gmra.mxu0 %v2066
        %v2182 = vpop.f32.mrf.mxu0
        %v2183 = vadd.f32 0.0, %v2182
        %2184 = vdwg.mxu0
        %v2185 = vmax.f32 %v2090, 0.0
        %v2186 = vmax.f32 %v2093, 0.0
        %v2187 = vmax.f32 %v2096, 0.0
        %v2188 = vmax.f32 %v2099, 0.0
        %v2189 = vmax.f32 %v2102, 0.0
        %v2190 = vmax.f32 %v2105, 0.0
        %v2191 = vmax.f32 %v2108, 0.0
        %v2192 = vmax.f32 %v2111, 0.0
        %v2193 = vmax.f32 %v2114, 0.0
        %v2194 = vmax.f32 %v2117, 0.0
        %v2195 = vmax.f32 %v2120, 0.0
        %v2196 = vmax.f32 %v2123, 0.0
        %v2197 = vmax.f32 %v2126, 0.0
        %v2198 = vmax.f32 %v2129, 0.0
        %v2199 = vmax.f32 %v2132, 0.0
        %v2200 = vmax.f32 %v2135, 0.0
        %v2201 = vmax.f32 %v2138, 0.0
        %v2202 = vmax.f32 %v2141, 0.0
        %v2203 = vmax.f32 %v2144, 0.0
        %v2204 = vmax.f32 %v2147, 0.0
        %v2205 = vmax.f32 %v2150, 0.0
        %v2206 = vmax.f32 %v2153, 0.0
        %v2207 = vmax.f32 %v2156, 0.0
        %v2208 = vmax.f32 %v2159, 0.0
        %v2209 = vmax.f32 %v2162, 0.0
        %v2210 = vmax.f32 %v2165, 0.0
        %v2211 = vmax.f32 %v2168, 0.0
        %v2212 = vmax.f32 %v2171, 0.0
        %v2213 = vmax.f32 %v2174, 0.0
        %v2214 = vmax.f32 %v2177, 0.0
        %v2215 = vmax.f32 %v2180, 0.0
        %v2216 = vmax.f32 %v2183, 0.0
        %2217 = vxpose.xlu0.b32.start [1/16] %v2185, 128
        %2218 = vxpose.xlu0.b32.cont [2/16] %v2186, 128
        %2219 = vxpose.xlu0.b32.cont [3/16] %v2187, 128
        %2220 = vxpose.xlu0.b32.cont [4/16] %v2188, 128
        %2221 = vxpose.xlu0.b32.cont [5/16] %v2189, 128
        %2222 = vxpose.xlu0.b32.cont [6/16] %v2190, 128
        %2223 = vxpose.xlu0.b32.cont [7/16] %v2191, 128
        %2224 = vxpose.xlu0.b32.cont [8/16] %v2192, 128
        %2225 = vxpose.xlu0.b32.cont [9/16] %v2193, 128
        %2226 = vxpose.xlu0.b32.cont [10/16] %v2194, 128
        %2227 = vxpose.xlu0.b32.cont [11/16] %v2195, 128
        %2228 = vxpose.xlu0.b32.cont [12/16] %v2196, 128
        %2229 = vxpose.xlu0.b32.cont [13/16] %v2197, 128
        %2230 = vxpose.xlu0.b32.cont [14/16] %v2198, 128
        %2231 = vxpose.xlu0.b32.cont [15/16] %v2199, 128
        %2232 = vxpose.xlu0.b32.end [16/16] %v2200, 128
        %v2233 = vpop.trf.xlu0
        %v2234 = vpop.trf.xlu0
        %v2235 = vpop.trf.xlu0
        %v2236 = vpop.trf.xlu0
        %v2237 = vpop.trf.xlu0
        %v2238 = vpop.trf.xlu0
        %v2239 = vpop.trf.xlu0
        %v2240 = vpop.trf.xlu0
        %v2241 = vpop.trf.xlu0
        %v2242 = vpop.trf.xlu0
        %v2243 = vpop.trf.xlu0
        %v2244 = vpop.trf.xlu0
        %v2245 = vpop.trf.xlu0
        %v2246 = vpop.trf.xlu0
        %v2247 = vpop.trf.xlu0
        %v2248 = vpop.trf.xlu0
        %2249 = vxpose.xlu0.b32.start [1/16] %v2201, 128
        %2250 = vxpose.xlu0.b32.cont [2/16] %v2202, 128
        %2251 = vxpose.xlu0.b32.cont [3/16] %v2203, 128
        %2252 = vxpose.xlu0.b32.cont [4/16] %v2204, 128
        %2253 = vxpose.xlu0.b32.cont [5/16] %v2205, 128
        %2254 = vxpose.xlu0.b32.cont [6/16] %v2206, 128
        %2255 = vxpose.xlu0.b32.cont [7/16] %v2207, 128
        %2256 = vxpose.xlu0.b32.cont [8/16] %v2208, 128
        %2257 = vxpose.xlu0.b32.cont [9/16] %v2209, 128
        %2258 = vxpose.xlu0.b32.cont [10/16] %v2210, 128
        %2259 = vxpose.xlu0.b32.cont [11/16] %v2211, 128
        %2260 = vxpose.xlu0.b32.cont [12/16] %v2212, 128
        %2261 = vxpose.xlu0.b32.cont [13/16] %v2213, 128
        %2262 = vxpose.xlu0.b32.cont [14/16] %v2214, 128
        %2263 = vxpose.xlu0.b32.cont [15/16] %v2215, 128
        %2264 = vxpose.xlu0.b32.end [16/16] %v2216, 128
        %v2265 = vpop.trf.xlu0
        %v2266 = vpop.trf.xlu0
        %v2267 = vpop.trf.xlu0
        %v2268 = vpop.trf.xlu0
        %v2269 = vpop.trf.xlu0
        %v2270 = vpop.trf.xlu0
        %v2271 = vpop.trf.xlu0
        %v2272 = vpop.trf.xlu0
        %v2273 = vpop.trf.xlu0
        %v2274 = vpop.trf.xlu0
        %v2275 = vpop.trf.xlu0
        %v2276 = vpop.trf.xlu0
        %v2277 = vpop.trf.xlu0
        %v2278 = vpop.trf.xlu0
        %v2279 = vpop.trf.xlu0
        %v2280 = vpop.trf.xlu0
        %2281 = vst [vmem:[%s136] sm:$0xff] %v2233
        %2282 = vst [vmem:[%s136 + $0x8] sm:$0xff] %v2265
        %s2283 = sand.u32 %s71, 1
        %s2284 = scalar_lea.sflag [#allocation5], %s2283
        %s2285 = sand.u32 %s71, 1
        %s2286 = smul.addr %s2285, 16
        %s2287 = scalar_lea.vmem [#allocation4], %s2286
        // Predicated region
        $region29: #{tpu_custom_call.1} parent=27 // pred_check
          %p2288 = pneg %p81
        $region30: #{tpu_custom_call.1} parent=27 // pred_check_branch
          %2290 = sbr.rel (%p2288) target = $region32
        $region31: #{tpu_custom_call.1} parent=27 // pred_region
          %2292 = vsyncadd %s2284, 0
          %s2293 = smul.addr %s16, 2
          %s2294 = smul.addr %s2293, 8
          %s2295 = scalar_lea.hbm %s2, %s2294
          %s2297 = sshll.u32 %s2287, 4
          %s2298 = int_to_ptr.vmem [resolvable:$true] %s2297
          %s2299 = sshll.u32 %s2295, 4
          %s2300 = int_to_ptr.hbm [resolvable:$true] %s2299
          %2302 = dma.vmem_to_hbm [thread:$0]  %s2298, 256, %s2300, %s2284
        $region32: #{tpu_custom_call.1} parent=27 // pred_fallthru
          _
      $region28: #{tpu_custom_call.1} parent=5 // pred_fallthru
        _
      %p2303 = scmp.le.s32.totalorder 2, %s11
      // Predicated region
      $region33: #{tpu_custom_call.1} parent=5 // pred_check
        %p2304 = pneg %p2303
      $region34: #{tpu_custom_call.1} parent=5 // pred_check_branch
        %2306 = sbr.rel (%p2304) target = $region36
      $region35: #{tpu_custom_call.1} parent=5 // pred_region
        %s2307 = ssub.s32 %s11, 2
        // Predicated region
        $region37: #{tpu_custom_call.1} parent=35 // pred_check
          %p2308 = pneg %p87
        $region38: #{tpu_custom_call.1} parent=35 // pred_check_branch
          %2310 = sbr.rel (%p2308) target = $region40
        $region39: #{tpu_custom_call.1} parent=35 // pred_region
          %s2311 = sand.u32 %s72, 1
          %s2312 = scalar_lea.sflag [#allocation5], %s2311
          %s2313 = sand.u32 %s72, 1
          %s2314 = smul.addr %s2313, 16
          %s2315 = scalar_lea.vmem [#allocation4], %s2314
          %2317 = dma.done %s2312, 256
        $region40: #{tpu_custom_call.1} parent=35 // pred_fallthru
          _
      $region36: #{tpu_custom_call.1} parent=5 // pred_fallthru
        _
    $region6: #{tpu_custom_call.1} parent=1 // loop_footer
      %s15 = sadd.s32 1, %s11
    $region7: #{tpu_custom_call.1} parent=1 // loop_footer_branch
      %10 = sbr.rel target = $region3
    $region8: #{tpu_custom_call.1} parent=1 // loop_exit
      _
    %2318 = vsyncpa [#allocation5], 1
    %s2319 = scalar_lea.sflag [#allocation5], 1
    %2320 = vsyncpa %s2319, 1

</llo_original>
